<compile_context>
chip_gen: v5e
topology: v5e:2x2
jax: 0.10.0
libtpu: 0.0.40
codegen_flags: <defaults>
</compile_context>

<pallas_src>
import math
import functools

import jax
import jax.numpy as jnp
from jax.experimental import pallas as pl
from jax.experimental.pallas import tpu as pltpu


# ----------------------------------------------------------------------------
# helpers
# ----------------------------------------------------------------------------
def _round_up(x, m):
    return ((x + m - 1) // m) * m


def positional_encoding_1d(d_model, length):
    pos = jnp.arange(length, dtype=jnp.float32)[:, None]
    div = jnp.exp(jnp.arange(0, d_model, 2, dtype=jnp.float32)
                  * (-math.log(10000.0) / d_model))
    pe = jnp.zeros((length, d_model), jnp.float32)
    pe = pe.at[:, 0::2].set(jnp.sin(pos * div))
    pe = pe.at[:, 1::2].set(jnp.cos(pos * div))
    return pe


def xavier_uniform(key, shape):
    fan_in, fan_out = shape
    a = math.sqrt(6.0 / (fan_in + fan_out))
    return jax.random.uniform(key, shape, jnp.float32, -a, a)


def _layer_norm(x, gamma, beta, d_true, lane_mask, eps=1e-5):
    """LayerNorm over the TRUE feature width d_true.

    Pad columns of x are exactly zero (zero-padded weights/biases), so sums
    over the padded width equal sums over the true width.  Variance uses the
    centred form; lane_mask keeps the pad columns of (x - mu) at exactly zero.
    gamma/beta are zero on pad columns, so the output pad columns stay zero.
    """
    inv_d = 1.0 / float(d_true)
    mu = jnp.sum(x, axis=-1, keepdims=True) * inv_d
    diff = x - mu if lane_mask is None else x - mu * lane_mask
    var = jnp.sum(diff * diff, axis=-1, keepdims=True) * inv_d
    return diff * jax.lax.rsqrt(var + eps) * gamma + beta


def _pick_batch_block(B, S, max_rows=512, target_rows=256):
    """Largest divisor of B with bB*S <= max_rows (prefer >=2 blocks if the
    rows stay MXU-sized, so both v7x TensorCores get work)."""
    best = 1
    for bb in range(1, B + 1):
        if B % bb == 0 and bb * S <= max_rows:
            best = bb
    if best == B and B > 1:
        for bb in range(B - 1, 0, -1):
            if B % bb == 0 and bb * S >= target_rows:
                best = bb
                break
    return best


def _vmem_limit_bytes(need):
    try:
        cap = pltpu.get_tpu_info().vmem_capacity_bytes
    except Exception:
        cap = 64 * 1024 * 1024          # conservative (v7x) fallback
    hard_cap = int(cap * 0.85)
    return max(min(max(need, 32 * 1024 * 1024), hard_cap), 16 * 1024 * 1024)


# ----------------------------------------------------------------------------
# Fused kernel: [embed-add] -> L x encoder layer -> class head
# grid = (batch_block, layer);  activations live in a VMEM scratch across layers.
# ----------------------------------------------------------------------------
def fused_kernel(tok_ref, feat_ref, wf_ref, bf_ref, pe_ref,
                 wqkv_ref, wo_ref, w1_ref, w2_ref, vecs_ref, b1_ref,
                 wc_ref, bc_ref,
                 out_ref,
                 x_ref, attn_sc,
                 *, nhead, hd_true, d_true):
    l = pl.program_id(1)
    n_layers = pl.num_programs(1)
    bB, S, Dp = x_ref.shape
    rows = bB * S
    hd_pad = Dp // nhead
    bf16, f32 = jnp.bfloat16, jnp.float32

    lane_mask = None
    if d_true != Dp:
        lane_mask = (jax.lax.broadcasted_iota(jnp.int32, (1, Dp), 1)
                     < d_true).astype(f32)

    # per-layer packed vectors (one small DMA):
    # rows = [bq, bk, bv, bo, b2, g1, be1, g2, be2], each (1, Dp)
    vecs = vecs_ref[0]
    bq, bk, bv = vecs[0:1], vecs[1:2], vecs[2:3]
    bo, b2 = vecs[3:4], vecs[4:5]
    g1, be1, g2, be2 = vecs[5:6], vecs[6:7], vecs[7:8], vecs[8:9]
    b1 = b1_ref[0]                                   # (1, FFp)

    # ---- first layer step: embedding-add into the resident activation ------
    @pl.when(l == 0)
    def _():
        fe = jnp.dot(feat_ref[...].reshape(rows, -1), wf_ref[...],
                     preferred_element_type=f32) + bf_ref[...]
        x_ref[...] = tok_ref[...].astype(f32) + fe.reshape(bB, S, Dp)

    x = x_ref[...]                                   # (bB, S, Dp) f32
    x2 = x.reshape(rows, Dp)
    xb = x2.astype(bf16)

    # ---- fused QKV projection (one weight DMA, one big matmul) --------------
    wqkv = wqkv_ref[0]                               # (Dp, 3Dp) bf16
    qkv = jnp.dot(xb, wqkv, preferred_element_type=f32)              # (rows, 3Dp)
    pe_qkv = jnp.dot(pe_ref[...], wqkv, preferred_element_type=f32)  # (S, 3Dp)
    scale = 1.0 / math.sqrt(float(hd_true))          # scale uses TRUE head dim

    # DETR-style: q = k = src + pos, value = src  (pos folded in post-matmul)
    q = ((qkv[:, :Dp].reshape(bB, S, Dp) + pe_qkv[None, :, :Dp] + bq[None])
         * scale).astype(bf16)
    k = (qkv[:, Dp:2 * Dp].reshape(bB, S, Dp) + pe_qkv[None, :, Dp:2 * Dp]
         + bk[None]).astype(bf16)
    v = (qkv[:, 2 * Dp:].reshape(bB, S, Dp) + bv[None]).astype(bf16)

    # ---- per-head attention: no transposes, one head's scores live at a time
    for h in range(nhead):
        sl = slice(h * hd_pad, (h + 1) * hd_pad)
        s = jnp.einsum('bqd,bkd->bqk', q[:, :, sl], k[:, :, sl],
                       preferred_element_type=f32)          # (bB, S, S)
        s = s - jnp.max(s, axis=-1, keepdims=True)
        p = jnp.exp(s)
        inv_l = pl.reciprocal(jnp.sum(p, axis=-1, keepdims=True), approx=True)
        oh = jnp.einsum('bqk,bkd->bqd', p.astype(bf16), v[:, :, sl],
                        preferred_element_type=f32) * inv_l
        attn_sc[:, :, sl] = oh

    attn = jnp.dot(attn_sc[...].reshape(rows, Dp).astype(bf16), wo_ref[0],
                   preferred_element_type=f32) + bo

    # residual + LayerNorm 1
    y = _layer_norm(x2 + attn, g1, be1, d_true, lane_mask)

    # feed-forward: linear2(relu(linear1(y)))
    h1 = jnp.dot(y.astype(bf16), w1_ref[0], preferred_element_type=f32) + b1
    h1 = jnp.maximum(h1, 0.0)
    h2 = jnp.dot(h1.astype(bf16), w2_ref[0], preferred_element_type=f32) + b2

    # residual + LayerNorm 2 -> carried activation
    x_new = _layer_norm(y + h2, g2, be2, d_true, lane_mask)
    x_ref[...] = x_new.reshape(bB, S, Dp)

    # ---- last layer step: classification head --------------------------------
    @pl.when(l == n_layers - 1)
    def _():
        logits = jnp.dot(x_new.astype(bf16), wc_ref[...],
                         preferred_element_type=f32) + bc_ref[...]
        out_ref[...] = logits.reshape(bB, S, -1)


def fused_forward(tok_emb, feats, params):
    B, S, Dp = tok_emb.shape
    Fp = feats.shape[-1]
    lp = params["layers"]
    L = lp["wqkv"].shape[0]
    FFp = lp["w1"].shape[-1]
    Cp = params["wc"].shape[-1]
    nhead = params["nhead"]
    hd_pad = Dp // nhead

    bB = _pick_batch_block(B, S)
    nB = B // bB
    rows = bB * S

    kernel = functools.partial(fused_kernel, nhead=nhead,
                               hd_true=params["hd"], d_true=params["d_model"])

    const2 = lambda b, l: (0, 0)
    per_b = lambda b, l: (b, 0, 0)
    per_l = lambda b, l: (l, 0, 0)

    operands = (tok_emb, feats,
                params["wf"], params["bf"], params["pe"],
                lp["wqkv"], lp["wo"], lp["w1"], lp["w2"],
                lp["vecs"], lp["b1"],
                params["wc"], params["bc"])

    # ---- advisory cost estimate (weights are re-streamed once per batch block)
    flops_layer = (2 * rows * Dp * 3 * Dp + 2 * S * Dp * 3 * Dp
                   + 2 * 2 * nhead * bB * S * S * hd_pad
                   + 2 * rows * Dp * Dp
                   + 2 * rows * Dp * FFp + 2 * rows * FFp * Dp)
    flops = nB * (L * flops_layer + 2 * rows * Fp * Dp + 2 * rows * Dp * Cp)
    transcendentals = nB * L * (nhead * bB * S * S + 2 * rows)
    layer_bytes = sum(int(a.size * a.dtype.itemsize) for a in
                      (lp["wqkv"], lp["wo"], lp["w1"], lp["w2"],
                       lp["vecs"], lp["b1"]))
    const_bytes = sum(int(a.size * a.dtype.itemsize) for a in
                      (params["wf"], params["bf"], params["pe"],
                       params["wc"], params["bc"]))
    act_bytes = (int(tok_emb.size * tok_emb.dtype.itemsize)
                 + int(feats.size * feats.dtype.itemsize) + B * S * Cp * 4)
    bytes_accessed = act_bytes + const_bytes + layer_bytes * nB

    # ---- generation-aware VMEM limit ----------------------------------------
    per_layer_blk = ((Dp * 3 * Dp + Dp * Dp + Dp * FFp + FFp * Dp) * 2
                     + (9 * Dp + FFp) * 4)
    per_batch_blk = (rows * Dp + rows * Fp) * 2 + rows * Cp * 4
    resident_blk = (Fp * Dp + S * Dp + Dp * Cp) * 2 + (Dp + Cp) * 4
    scratch_b = 2 * rows * Dp * 4
    interm = (rows * (3 * Dp + FFp + 8 * Dp) * 4
              + 4 * bB * S * S * 4 + S * 3 * Dp * 4)
    need = int((2 * (per_layer_blk + per_batch_blk) + 2 * resident_blk
                + scratch_b + interm) * 1.25) + (4 << 20)
    vmem_limit = _vmem_limit_bytes(need)

    return pl.pallas_call(
        kernel,
        out_shape=jax.ShapeDtypeStruct((B, S, Cp), jnp.float32),
        grid=(nB, L),
        in_specs=[
            pl.BlockSpec((bB, S, Dp), per_b),       # tok_emb (bf16)
            pl.BlockSpec((bB, S, Fp), per_b),       # features (bf16, padded)
            pl.BlockSpec((Fp, Dp), const2),         # wf   (bf16, resident)
            pl.BlockSpec((1, Dp), const2),          # bf
            pl.BlockSpec((S, Dp), const2),          # pe   (bf16, resident)
            pl.BlockSpec((1, Dp, 3 * Dp), per_l),   # fused Wqkv (streamed)
            pl.BlockSpec((1, Dp, Dp), per_l),       # wo
            pl.BlockSpec((1, Dp, FFp), per_l),      # w1
            pl.BlockSpec((1, FFp, Dp), per_l),      # w2
            pl.BlockSpec((1, 9, Dp), per_l),        # packed per-layer vectors
            pl.BlockSpec((1, 1, FFp), per_l),       # b1
            pl.BlockSpec((Dp, Cp), const2),         # wc   (resident)
            pl.BlockSpec((1, Cp), const2),          # bc
        ],
        out_specs=pl.BlockSpec((bB, S, Cp), per_b),
        scratch_shapes=[pltpu.VMEM((bB, S, Dp), jnp.float32),   # resident acts
                        pltpu.VMEM((bB, S, Dp), jnp.float32)],  # head assembly
        compiler_params=pltpu.CompilerParams(
            dimension_semantics=("parallel", "arbitrary"),
            vmem_limit_bytes=int(vmem_limit)),
        cost_estimate=pl.CostEstimate(flops=int(flops),
                                      transcendentals=int(transcendentals),
                                      bytes_accessed=int(bytes_accessed)),
    )(*operands)


# ----------------------------------------------------------------------------
# Parameter setup: true-shape xavier init, then pad/pack to lane-dense layout.
# ----------------------------------------------------------------------------
def make_params(key, *, num_classes, vocab_size, max_seq_len, feature_dim,
                d_model, nhead, num_encoder_layers, dim_feedforward):
    assert d_model % nhead == 0 and d_model % 2 == 0
    hd = d_model // nhead
    Dp = _round_up(d_model, 128)
    assert Dp % nhead == 0, "padded d_model must stay divisible by nhead"
    hd_pad = Dp // nhead
    assert hd_pad >= hd
    Fp = _round_up(feature_dim, 128)
    FFp = _round_up(dim_feedforward, 128)
    Cp = _round_up(num_classes, 128)

    keys = iter(jax.random.split(key, 3 + 6 * num_encoder_layers))
    bf16 = jnp.bfloat16

    def pad2(a, r, c):
        return jnp.pad(a, ((0, r - a.shape[0]), (0, c - a.shape[1])))

    def head_pack_cols(w):     # (d_model, d_model) -> (d_model, Dp)
        t = w.reshape(w.shape[0], nhead, hd)
        t = jnp.pad(t, ((0, 0), (0, 0), (0, hd_pad - hd)))
        return t.reshape(w.shape[0], Dp)

    def head_pack_rows(w):     # (d_model, d_model) -> (Dp, d_model)
        t = w.reshape(nhead, hd, w.shape[1])
        t = jnp.pad(t, ((0, 0), (0, hd_pad - hd), (0, 0)))
        return t.reshape(Dp, w.shape[1])

    embed_table = xavier_uniform(next(keys), (vocab_size, d_model))
    wf = xavier_uniform(next(keys), (feature_dim, d_model))
    wc = xavier_uniform(next(keys), (d_model, num_classes))

    wqkv_l, wo_l, w1_l, w2_l, vecs_l, b1_l = [], [], [], [], [], []
    for _ in range(num_encoder_layers):
        wq = xavier_uniform(next(keys), (d_model, d_model))
        wk = xavier_uniform(next(keys), (d_model, d_model))
        wv = xavier_uniform(next(keys), (d_model, d_model))
        wo = xavier_uniform(next(keys), (d_model, d_model))
        w1 = xavier_uniform(next(keys), (d_model, dim_feedforward))
        w2 = xavier_uniform(next(keys), (dim_feedforward, d_model))

        pack = lambda w: jnp.pad(head_pack_cols(w), ((0, Dp - d_model), (0, 0)))
        wqkv_l.append(jnp.concatenate([pack(wq), pack(wk), pack(wv)],
                                      axis=1).astype(bf16))
        wo_l.append(jnp.pad(head_pack_rows(wo),
                            ((0, 0), (0, Dp - d_model))).astype(bf16))
        w1_l.append(pad2(w1, Dp, FFp).astype(bf16))
        w2_l.append(pad2(w2, FFp, Dp).astype(bf16))

        ones = jnp.pad(jnp.ones((1, d_model), jnp.float32),
                       ((0, 0), (0, Dp - d_model)))
        zero = jnp.zeros((1, Dp), jnp.float32)
        # rows: bq, bk, bv, bo, b2, g1, be1, g2, be2 (biases zero here; a real
        # checkpoint would head-pack bq/bk/bv like the weight columns)
        vecs_l.append(jnp.concatenate(
            [zero, zero, zero, zero, zero, ones, zero, ones, zero], axis=0))
        b1_l.append(jnp.zeros((1, FFp), jnp.float32))

    layers = dict(
        wqkv=jnp.stack(wqkv_l), wo=jnp.stack(wo_l),
        w1=jnp.stack(w1_l), w2=jnp.stack(w2_l),
        vecs=jnp.stack(vecs_l), b1=jnp.stack(b1_l))

    pe = positional_encoding_1d(d_model, max_seq_len)
    return dict(
        nhead=nhead, hd=hd, d_model=d_model, num_classes=num_classes,
        embed_table=jnp.pad(embed_table,
                            ((0, 0), (0, Dp - d_model))).astype(bf16),
        wf=pad2(wf, Fp, Dp).astype(bf16),
        bf=jnp.zeros((1, Dp), jnp.float32),
        wc=pad2(wc, Dp, Cp).astype(bf16),
        bc=jnp.zeros((1, Cp), jnp.float32),
        pe=jnp.pad(pe, ((0, 0), (0, Dp - d_model))).astype(bf16),
        layers=layers)


# ----------------------------------------------------------------------------
# Full forward
# ----------------------------------------------------------------------------
def omics_transformer_segmentation_forward(tokens, features, params):
    # token embedding as a gather (no one-hot matmul); bf16 activations into
    # the kernel halve the input DMA.
    # TODO(synk): optionally fuse the gather into the kernel via scalar-prefetch
    #             row indices (pl.Element) instead of materializing tok_emb.
    tok_emb = jnp.take(params["embed_table"], tokens, axis=0)      # (B,S,Dp) bf16
    Fp = params["wf"].shape[0]
    feats = jnp.pad(features,
                    ((0, 0), (0, 0), (0, Fp - features.shape[-1]))
                    ).astype(jnp.bfloat16)
    logits_padded = fused_forward(tok_emb, feats, params)          # (B, S, Cp)
    return logits_padded[..., :params["num_classes"]]


# ----------------------------------------------------------------------------
if __name__ == "__main__":
    batch = 2
    max_seq_len = 8
    vocab_size = 20
    feature_dim = 16
    d_model = 32
    nhead = 4
    num_encoder_layers = 2
    dim_feedforward = 64
    num_classes = 5

    key = jax.random.PRNGKey(0)
    k_param, k_tok, k_feat = jax.random.split(key, 3)

    params = make_params(
        k_param,
        num_classes=num_classes, vocab_size=vocab_size,
        max_seq_len=max_seq_len, feature_dim=feature_dim,
        d_model=d_model, nhead=nhead,
        num_encoder_layers=num_encoder_layers,
        dim_feedforward=dim_feedforward)

    tokens = jax.random.randint(k_tok, (batch, max_seq_len), 0, vocab_size,
                                dtype=jnp.int32)
    features = jax.random.normal(k_feat, (batch, max_seq_len, feature_dim),
                                 dtype=jnp.float32)

    out = omics_transformer_segmentation_forward(tokens, features, params)
    out = jax.block_until_ready(out)
    assert out.shape == (batch, max_seq_len, num_classes)
    assert bool(jnp.all(jnp.isfinite(out)))
    print("KERNEL_OK")
</pallas_src>

<mosaic_0001>
module attributes {stable_mosaic.version = 11 : i64} {
  func.func @fused_kernel(%arg0: i32, %arg1: i32, %arg2: memref<2x8x128xbf16, #tpu.memory_space<vmem>>, %arg3: memref<2x8x128xbf16, #tpu.memory_space<vmem>>, %arg4: memref<128x128xbf16, #tpu.memory_space<vmem>>, %arg5: memref<1x128xf32, #tpu.memory_space<vmem>>, %arg6: memref<8x128xbf16, #tpu.memory_space<vmem>>, %arg7: memref<1x128x384xbf16, #tpu.memory_space<vmem>>, %arg8: memref<1x128x128xbf16, #tpu.memory_space<vmem>>, %arg9: memref<1x128x128xbf16, #tpu.memory_space<vmem>>, %arg10: memref<1x128x128xbf16, #tpu.memory_space<vmem>>, %arg11: memref<1x9x128xf32, #tpu.memory_space<vmem>>, %arg12: memref<1x1x128xf32, #tpu.memory_space<vmem>>, %arg13: memref<128x128xbf16, #tpu.memory_space<vmem>>, %arg14: memref<1x128xf32, #tpu.memory_space<vmem>>, %arg15: memref<2x8x128xf32, #tpu.memory_space<vmem>>, %arg16: memref<2x8x128xf32, #tpu.memory_space<vmem>>, %arg17: memref<2x8x128xf32, #tpu.memory_space<vmem>>) attributes {dimension_semantics = [#tpu.dimension_semantics<parallel>, #tpu.dimension_semantics<arbitrary>], iteration_bounds = array<i64: 1, 2>, scalar_prefetch = 0 : i64, scratch_operands = 2 : i64, tpu.core_type = #tpu.core_type<tc>, window_params = [{transform_indices = @transform_0, window_bounds = array<i64: 2, 8, 128>}, {transform_indices = @transform_1, window_bounds = array<i64: 2, 8, 128>}, {pipeline_mode = #tpu.pipeline_mode<synchronous>, transform_indices = @transform_2, window_bounds = array<i64: 128, 128>}, {pipeline_mode = #tpu.pipeline_mode<synchronous>, transform_indices = @transform_3, window_bounds = array<i64: 1, 128>}, {pipeline_mode = #tpu.pipeline_mode<synchronous>, transform_indices = @transform_4, window_bounds = array<i64: 8, 128>}, {transform_indices = @transform_5, window_bounds = array<i64: 1, 128, 384>}, {transform_indices = @transform_6, window_bounds = array<i64: 1, 128, 128>}, {transform_indices = @transform_7, window_bounds = array<i64: 1, 128, 128>}, {transform_indices = @transform_8, window_bounds = array<i64: 1, 128, 128>}, {transform_indices = @transform_9, window_bounds = array<i64: 1, 9, 128>}, {transform_indices = @transform_10, window_bounds = array<i64: 1, 1, 128>}, {pipeline_mode = #tpu.pipeline_mode<synchronous>, transform_indices = @transform_11, window_bounds = array<i64: 128, 128>}, {pipeline_mode = #tpu.pipeline_mode<synchronous>, transform_indices = @transform_12, window_bounds = array<i64: 1, 128>}, {transform_indices = @transform_13, window_bounds = array<i64: 2, 8, 128>}]} {
    %0 = tpu.iota {dimensions = array<i32: 1>} : vector<1x128xi32>
    %c32_i32 = arith.constant 32 : i32
    %1 = vector.broadcast %c32_i32 : i32 to vector<1x128xi32>
    %2 = arith.cmpi slt, %0, %1 : vector<1x128xi32>
    %3 = arith.extui %2 : vector<1x128xi1> to vector<1x128xi32>
    %4 = arith.sitofp %3 : vector<1x128xi32> to vector<1x128xf32>
    %c0 = arith.constant 0 : index
    %c0_0 = arith.constant 0 : index
    %c0_1 = arith.constant 0 : index
    %5 = vector.load %arg11[%c0, %c0_0, %c0_1] : memref<1x9x128xf32, #tpu.memory_space<vmem>>, vector<1x9x128xf32>
    %6 = vector.shape_cast %5 : vector<1x9x128xf32> to vector<9x128xf32>
    %7 = vector.extract_strided_slice %6 {offsets = [0, 0], sizes = [1, 128], strides = [1, 1]} : vector<9x128xf32> to vector<1x128xf32>
    %8 = vector.extract_strided_slice %6 {offsets = [1, 0], sizes = [1, 128], strides = [1, 1]} : vector<9x128xf32> to vector<1x128xf32>
    %9 = vector.extract_strided_slice %6 {offsets = [2, 0], sizes = [1, 128], strides = [1, 1]} : vector<9x128xf32> to vector<1x128xf32>
    %10 = vector.extract_strided_slice %6 {offsets = [3, 0], sizes = [1, 128], strides = [1, 1]} : vector<9x128xf32> to vector<1x128xf32>
    %11 = vector.extract_strided_slice %6 {offsets = [4, 0], sizes = [1, 128], strides = [1, 1]} : vector<9x128xf32> to vector<1x128xf32>
    %12 = vector.extract_strided_slice %6 {offsets = [5, 0], sizes = [1, 128], strides = [1, 1]} : vector<9x128xf32> to vector<1x128xf32>
    %13 = vector.extract_strided_slice %6 {offsets = [6, 0], sizes = [1, 128], strides = [1, 1]} : vector<9x128xf32> to vector<1x128xf32>
    %14 = vector.extract_strided_slice %6 {offsets = [7, 0], sizes = [1, 128], strides = [1, 1]} : vector<9x128xf32> to vector<1x128xf32>
    %15 = vector.extract_strided_slice %6 {offsets = [8, 0], sizes = [1, 128], strides = [1, 1]} : vector<9x128xf32> to vector<1x128xf32>
    %c0_2 = arith.constant 0 : index
    %c0_3 = arith.constant 0 : index
    %c0_4 = arith.constant 0 : index
    %16 = vector.load %arg12[%c0_2, %c0_3, %c0_4] : memref<1x1x128xf32, #tpu.memory_space<vmem>>, vector<1x1x128xf32>
    %17 = vector.shape_cast %16 : vector<1x1x128xf32> to vector<1x128xf32>
    %c0_i32 = arith.constant 0 : i32
    %18 = arith.cmpi eq, %arg1, %c0_i32 : i32
    %19 = arith.extui %18 : i1 to i32
    %c0_i32_5 = arith.constant 0 : i32
    %20 = arith.cmpi ne, %19, %c0_i32_5 : i32
    scf.if %20 {
      %c0_71 = arith.constant 0 : index
      %c0_72 = arith.constant 0 : index
      %c0_73 = arith.constant 0 : index
      %198 = vector.load %arg3[%c0_71, %c0_72, %c0_73] : memref<2x8x128xbf16, #tpu.memory_space<vmem>>, vector<2x8x128xbf16>
      %199 = vector.shape_cast %198 : vector<2x8x128xbf16> to vector<16x128xbf16>
      %c0_74 = arith.constant 0 : index
      %c0_75 = arith.constant 0 : index
      %200 = vector.load %arg4[%c0_74, %c0_75] : memref<128x128xbf16, #tpu.memory_space<vmem>>, vector<128x128xbf16>
      %cst_76 = arith.constant dense<0.000000e+00> : vector<16x128xf32>
      %201 = tpu.matmul %199, %200, %cst_76 {dimension_numbers = #tpu.dot_dimension_numbers<[1], [0], [0], [1], [0, 0, 1, 1], [], []>} : vector<16x128xbf16>, vector<128x128xbf16>, vector<16x128xf32> -> vector<16x128xf32>
      %c0_77 = arith.constant 0 : index
      %c0_78 = arith.constant 0 : index
      %202 = vector.load %arg5[%c0_77, %c0_78] : memref<1x128xf32, #tpu.memory_space<vmem>>, vector<1x128xf32>
      %203 = vector.broadcast %202 : vector<1x128xf32> to vector<16x128xf32>
      %204 = arith.addf %201, %203 : vector<16x128xf32>
      %c0_79 = arith.constant 0 : index
      %c0_80 = arith.constant 0 : index
      %c0_81 = arith.constant 0 : index
      %205 = vector.load %arg2[%c0_79, %c0_80, %c0_81] : memref<2x8x128xbf16, #tpu.memory_space<vmem>>, vector<2x8x128xbf16>
      %206 = arith.extf %205 : vector<2x8x128xbf16> to vector<2x8x128xf32>
      %207 = vector.shape_cast %204 : vector<16x128xf32> to vector<2x8x128xf32>
      %208 = arith.addf %206, %207 : vector<2x8x128xf32>
      %c0_82 = arith.constant 0 : index
      %c0_83 = arith.constant 0 : index
      %c0_84 = arith.constant 0 : index
      %209 = vector.load %arg16[%c0_82, %c0_83, %c0_84] : memref<2x8x128xf32, #tpu.memory_space<vmem>>, vector<2x8x128xf32>
      tpu.vector_store %arg16[%c0_82, %c0_83, %c0_84], %208 {strides = array<i32>} : memref<2x8x128xf32, #tpu.memory_space<vmem>>, vector<2x8x128xf32>,
    } else {
    }
    %c0_6 = arith.constant 0 : index
    %c0_7 = arith.constant 0 : index
    %c0_8 = arith.constant 0 : index
    %21 = vector.load %arg16[%c0_6, %c0_7, %c0_8] : memref<2x8x128xf32, #tpu.memory_space<vmem>>, vector<2x8x128xf32>
    %22 = vector.shape_cast %21 : vector<2x8x128xf32> to vector<16x128xf32>
    %23 = arith.truncf %22 : vector<16x128xf32> to vector<16x128xbf16>
    %c0_9 = arith.constant 0 : index
    %c0_10 = arith.constant 0 : index
    %c0_11 = arith.constant 0 : index
    %24 = vector.load %arg7[%c0_9, %c0_10, %c0_11] : memref<1x128x384xbf16, #tpu.memory_space<vmem>>, vector<1x128x384xbf16>
    %25 = vector.shape_cast %24 : vector<1x128x384xbf16> to vector<128x384xbf16>
    %cst = arith.constant dense<0.000000e+00> : vector<16x384xf32>
    %26 = tpu.matmul %23, %25, %cst {dimension_numbers = #tpu.dot_dimension_numbers<[1], [0], [0], [1], [0, 0, 1, 1], [], []>} : vector<16x128xbf16>, vector<128x384xbf16>, vector<16x384xf32> -> vector<16x384xf32>
    %c0_12 = arith.constant 0 : index
    %c0_13 = arith.constant 0 : index
    %27 = vector.load %arg6[%c0_12, %c0_13] : memref<8x128xbf16, #tpu.memory_space<vmem>>, vector<8x128xbf16>
    %cst_14 = arith.constant dense<0.000000e+00> : vector<8x384xf32>
    %28 = tpu.matmul %27, %25, %cst_14 {dimension_numbers = #tpu.dot_dimension_numbers<[1], [0], [0], [1], [0, 0, 1, 1], [], []>} : vector<8x128xbf16>, vector<128x384xbf16>, vector<8x384xf32> -> vector<8x384xf32>
    %29 = vector.extract_strided_slice %26 {offsets = [0, 0], sizes = [16, 128], strides = [1, 1]} : vector<16x384xf32> to vector<16x128xf32>
    %30 = vector.shape_cast %29 : vector<16x128xf32> to vector<2x8x128xf32>
    %31 = vector.extract_strided_slice %28 {offsets = [0, 0], sizes = [8, 128], strides = [1, 1]} : vector<8x384xf32> to vector<8x128xf32>
    %32 = vector.shape_cast %31 : vector<8x128xf32> to vector<1x8x128xf32>
    %33 = vector.broadcast %32 : vector<1x8x128xf32> to vector<2x8x128xf32>
    %34 = arith.addf %30, %33 : vector<2x8x128xf32>
    %35 = vector.shape_cast %7 : vector<1x128xf32> to vector<1x1x128xf32>
    %36 = vector.broadcast %35 : vector<1x1x128xf32> to vector<2x8x128xf32>
    %37 = arith.addf %34, %36 : vector<2x8x128xf32>
    %cst_15 = arith.constant 0.353553385 : f32
    %38 = vector.broadcast %cst_15 : f32 to vector<2x8x128xf32>
    %39 = arith.mulf %37, %38 : vector<2x8x128xf32>
    %40 = arith.truncf %39 : vector<2x8x128xf32> to vector<2x8x128xbf16>
    %41 = vector.extract_strided_slice %26 {offsets = [0, 128], sizes = [16, 128], strides = [1, 1]} : vector<16x384xf32> to vector<16x128xf32>
    %42 = vector.shape_cast %41 : vector<16x128xf32> to vector<2x8x128xf32>
    %43 = vector.extract_strided_slice %28 {offsets = [0, 128], sizes = [8, 128], strides = [1, 1]} : vector<8x384xf32> to vector<8x128xf32>
    %44 = vector.shape_cast %43 : vector<8x128xf32> to vector<1x8x128xf32>
    %45 = vector.broadcast %44 : vector<1x8x128xf32> to vector<2x8x128xf32>
    %46 = arith.addf %42, %45 : vector<2x8x128xf32>
    %47 = vector.shape_cast %8 : vector<1x128xf32> to vector<1x1x128xf32>
    %48 = vector.broadcast %47 : vector<1x1x128xf32> to vector<2x8x128xf32>
    %49 = arith.addf %46, %48 : vector<2x8x128xf32>
    %50 = arith.truncf %49 : vector<2x8x128xf32> to vector<2x8x128xbf16>
    %51 = vector.extract_strided_slice %26 {offsets = [0, 256], sizes = [16, 128], strides = [1, 1]} : vector<16x384xf32> to vector<16x128xf32>
    %52 = vector.shape_cast %51 : vector<16x128xf32> to vector<2x8x128xf32>
    %53 = vector.shape_cast %9 : vector<1x128xf32> to vector<1x1x128xf32>
    %54 = vector.broadcast %53 : vector<1x1x128xf32> to vector<2x8x128xf32>
    %55 = arith.addf %52, %54 : vector<2x8x128xf32>
    %56 = arith.truncf %55 : vector<2x8x128xf32> to vector<2x8x128xbf16>
    %57 = vector.extract_strided_slice %40 {offsets = [0, 0, 0], sizes = [2, 8, 32], strides = [1, 1, 1]} : vector<2x8x128xbf16> to vector<2x8x32xbf16>
    %58 = vector.extract_strided_slice %50 {offsets = [0, 0, 0], sizes = [2, 8, 32], strides = [1, 1, 1]} : vector<2x8x128xbf16> to vector<2x8x32xbf16>
    "tpu.trace_start"() <{level = 10 : i32, message = "bqd,bkd->bqk"}> : () -> ()
    %cst_16 = arith.constant dense<0.000000e+00> : vector<2x8x8xf32>
    %59 = tpu.matmul %57, %58, %cst_16 {dimension_numbers = #tpu.dot_dimension_numbers<[2], [2], [1], [1], [0, 0, 0, 1, 1, 1], [0], [0]>} : vector<2x8x32xbf16>, vector<2x8x32xbf16>, vector<2x8x8xf32> -> vector<2x8x8xf32>
    "tpu.trace_stop"() : () -> ()
    %cst_17 = arith.constant dense<0xFF800000> : vector<2x8xf32>
    %60 = vector.multi_reduction <maximumf>, %59, %cst_17 [2] : vector<2x8x8xf32> to vector<2x8xf32>
    %61 = vector.shape_cast %60 : vector<2x8xf32> to vector<2x8x1xf32>
    %62 = vector.broadcast %61 : vector<2x8x1xf32> to vector<2x8x8xf32>
    %63 = arith.subf %59, %62 : vector<2x8x8xf32>
    %64 = math.exp %63 : vector<2x8x8xf32>
    %cst_18 = arith.constant dense<0.000000e+00> : vector<2x8xf32>
    %65 = vector.multi_reduction <add>, %64, %cst_18 [2] : vector<2x8x8xf32> to vector<2x8xf32>
    %66 = vector.shape_cast %65 : vector<2x8xf32> to vector<2x8x1xf32>
    %67 = tpu.reciprocal %66 {approx = true} : vector<2x8x1xf32> -> vector<2x8x1xf32>
    %68 = arith.truncf %64 : vector<2x8x8xf32> to vector<2x8x8xbf16>
    %69 = vector.extract_strided_slice %56 {offsets = [0, 0, 0], sizes = [2, 8, 32], strides = [1, 1, 1]} : vector<2x8x128xbf16> to vector<2x8x32xbf16>
    "tpu.trace_start"() <{level = 10 : i32, message = "bqk,bkd->bqd"}> : () -> ()
    %cst_19 = arith.constant dense<0.000000e+00> : vector<2x8x32xf32>
    %70 = tpu.matmul %68, %69, %cst_19 {dimension_numbers = #tpu.dot_dimension_numbers<[2], [1], [1], [2], [0, 0, 0, 1, 1, 2], [0], [0]>} : vector<2x8x8xbf16>, vector<2x8x32xbf16>, vector<2x8x32xf32> -> vector<2x8x32xf32>
    "tpu.trace_stop"() : () -> ()
    %71 = vector.broadcast %67 : vector<2x8x1xf32> to vector<2x8x32xf32>
    %72 = arith.mulf %70, %71 : vector<2x8x32xf32>
    %c0_20 = arith.constant 0 : index
    %c0_21 = arith.constant 0 : index
    %c0_22 = arith.constant 0 : index
    %73 = vector.load %arg17[%c0_20, %c0_21, %c0_22] : memref<2x8x128xf32, #tpu.memory_space<vmem>>, vector<2x8x32xf32>
    tpu.vector_store %arg17[%c0_20, %c0_21, %c0_22], %72 {strides = array<i32>} : memref<2x8x128xf32, #tpu.memory_space<vmem>>, vector<2x8x32xf32>,
    %74 = vector.extract_strided_slice %40 {offsets = [0, 0, 32], sizes = [2, 8, 32], strides = [1, 1, 1]} : vector<2x8x128xbf16> to vector<2x8x32xbf16>
    %75 = vector.extract_strided_slice %50 {offsets = [0, 0, 32], sizes = [2, 8, 32], strides = [1, 1, 1]} : vector<2x8x128xbf16> to vector<2x8x32xbf16>
    "tpu.trace_start"() <{level = 10 : i32, message = "bqd,bkd->bqk"}> : () -> ()
    %cst_23 = arith.constant dense<0.000000e+00> : vector<2x8x8xf32>
    %76 = tpu.matmul %74, %75, %cst_23 {dimension_numbers = #tpu.dot_dimension_numbers<[2], [2], [1], [1], [0, 0, 0, 1, 1, 1], [0], [0]>} : vector<2x8x32xbf16>, vector<2x8x32xbf16>, vector<2x8x8xf32> -> vector<2x8x8xf32>
    "tpu.trace_stop"() : () -> ()
    %cst_24 = arith.constant dense<0xFF800000> : vector<2x8xf32>
    %77 = vector.multi_reduction <maximumf>, %76, %cst_24 [2] : vector<2x8x8xf32> to vector<2x8xf32>
    %78 = vector.shape_cast %77 : vector<2x8xf32> to vector<2x8x1xf32>
    %79 = vector.broadcast %78 : vector<2x8x1xf32> to vector<2x8x8xf32>
    %80 = arith.subf %76, %79 : vector<2x8x8xf32>
    %81 = math.exp %80 : vector<2x8x8xf32>
    %cst_25 = arith.constant dense<0.000000e+00> : vector<2x8xf32>
    %82 = vector.multi_reduction <add>, %81, %cst_25 [2] : vector<2x8x8xf32> to vector<2x8xf32>
    %83 = vector.shape_cast %82 : vector<2x8xf32> to vector<2x8x1xf32>
    %84 = tpu.reciprocal %83 {approx = true} : vector<2x8x1xf32> -> vector<2x8x1xf32>
    %85 = arith.truncf %81 : vector<2x8x8xf32> to vector<2x8x8xbf16>
    %86 = vector.extract_strided_slice %56 {offsets = [0, 0, 32], sizes = [2, 8, 32], strides = [1, 1, 1]} : vector<2x8x128xbf16> to vector<2x8x32xbf16>
    "tpu.trace_start"() <{level = 10 : i32, message = "bqk,bkd->bqd"}> : () -> ()
    %cst_26 = arith.constant dense<0.000000e+00> : vector<2x8x32xf32>
    %87 = tpu.matmul %85, %86, %cst_26 {dimension_numbers = #tpu.dot_dimension_numbers<[2], [1], [1], [2], [0, 0, 0, 1, 1, 2], [0], [0]>} : vector<2x8x8xbf16>, vector<2x8x32xbf16>, vector<2x8x32xf32> -> vector<2x8x32xf32>
    "tpu.trace_stop"() : () -> ()
    %88 = vector.broadcast %84 : vector<2x8x1xf32> to vector<2x8x32xf32>
    %89 = arith.mulf %87, %88 : vector<2x8x32xf32>
    %c0_27 = arith.constant 0 : index
    %c0_28 = arith.constant 0 : index
    %c32 = arith.constant 32 : index
    %90 = vector.load %arg17[%c0_27, %c0_28, %c32] : memref<2x8x128xf32, #tpu.memory_space<vmem>>, vector<2x8x32xf32>
    tpu.vector_store %arg17[%c0_27, %c0_28, %c32], %89 {strides = array<i32>} : memref<2x8x128xf32, #tpu.memory_space<vmem>>, vector<2x8x32xf32>,
    %91 = vector.extract_strided_slice %40 {offsets = [0, 0, 64], sizes = [2, 8, 32], strides = [1, 1, 1]} : vector<2x8x128xbf16> to vector<2x8x32xbf16>
    %92 = vector.extract_strided_slice %50 {offsets = [0, 0, 64], sizes = [2, 8, 32], strides = [1, 1, 1]} : vector<2x8x128xbf16> to vector<2x8x32xbf16>
    "tpu.trace_start"() <{level = 10 : i32, message = "bqd,bkd->bqk"}> : () -> ()
    %cst_29 = arith.constant dense<0.000000e+00> : vector<2x8x8xf32>
    %93 = tpu.matmul %91, %92, %cst_29 {dimension_numbers = #tpu.dot_dimension_numbers<[2], [2], [1], [1], [0, 0, 0, 1, 1, 1], [0], [0]>} : vector<2x8x32xbf16>, vector<2x8x32xbf16>, vector<2x8x8xf32> -> vector<2x8x8xf32>
    "tpu.trace_stop"() : () -> ()
    %cst_30 = arith.constant dense<0xFF800000> : vector<2x8xf32>
    %94 = vector.multi_reduction <maximumf>, %93, %cst_30 [2] : vector<2x8x8xf32> to vector<2x8xf32>
    %95 = vector.shape_cast %94 : vector<2x8xf32> to vector<2x8x1xf32>
    %96 = vector.broadcast %95 : vector<2x8x1xf32> to vector<2x8x8xf32>
    %97 = arith.subf %93, %96 : vector<2x8x8xf32>
    %98 = math.exp %97 : vector<2x8x8xf32>
    %cst_31 = arith.constant dense<0.000000e+00> : vector<2x8xf32>
    %99 = vector.multi_reduction <add>, %98, %cst_31 [2] : vector<2x8x8xf32> to vector<2x8xf32>
    %100 = vector.shape_cast %99 : vector<2x8xf32> to vector<2x8x1xf32>
    %101 = tpu.reciprocal %100 {approx = true} : vector<2x8x1xf32> -> vector<2x8x1xf32>
    %102 = arith.truncf %98 : vector<2x8x8xf32> to vector<2x8x8xbf16>
    %103 = vector.extract_strided_slice %56 {offsets = [0, 0, 64], sizes = [2, 8, 32], strides = [1, 1, 1]} : vector<2x8x128xbf16> to vector<2x8x32xbf16>
    "tpu.trace_start"() <{level = 10 : i32, message = "bqk,bkd->bqd"}> : () -> ()
    %cst_32 = arith.constant dense<0.000000e+00> : vector<2x8x32xf32>
    %104 = tpu.matmul %102, %103, %cst_32 {dimension_numbers = #tpu.dot_dimension_numbers<[2], [1], [1], [2], [0, 0, 0, 1, 1, 2], [0], [0]>} : vector<2x8x8xbf16>, vector<2x8x32xbf16>, vector<2x8x32xf32> -> vector<2x8x32xf32>
    "tpu.trace_stop"() : () -> ()
    %105 = vector.broadcast %101 : vector<2x8x1xf32> to vector<2x8x32xf32>
    %106 = arith.mulf %104, %105 : vector<2x8x32xf32>
    %c0_33 = arith.constant 0 : index
    %c0_34 = arith.constant 0 : index
    %c64 = arith.constant 64 : index
    %107 = vector.load %arg17[%c0_33, %c0_34, %c64] : memref<2x8x128xf32, #tpu.memory_space<vmem>>, vector<2x8x32xf32>
    tpu.vector_store %arg17[%c0_33, %c0_34, %c64], %106 {strides = array<i32>} : memref<2x8x128xf32, #tpu.memory_space<vmem>>, vector<2x8x32xf32>,
    %108 = vector.extract_strided_slice %40 {offsets = [0, 0, 96], sizes = [2, 8, 32], strides = [1, 1, 1]} : vector<2x8x128xbf16> to vector<2x8x32xbf16>
    %109 = vector.extract_strided_slice %50 {offsets = [0, 0, 96], sizes = [2, 8, 32], strides = [1, 1, 1]} : vector<2x8x128xbf16> to vector<2x8x32xbf16>
    "tpu.trace_start"() <{level = 10 : i32, message = "bqd,bkd->bqk"}> : () -> ()
    %cst_35 = arith.constant dense<0.000000e+00> : vector<2x8x8xf32>
    %110 = tpu.matmul %108, %109, %cst_35 {dimension_numbers = #tpu.dot_dimension_numbers<[2], [2], [1], [1], [0, 0, 0, 1, 1, 1], [0], [0]>} : vector<2x8x32xbf16>, vector<2x8x32xbf16>, vector<2x8x8xf32> -> vector<2x8x8xf32>
    "tpu.trace_stop"() : () -> ()
    %cst_36 = arith.constant dense<0xFF800000> : vector<2x8xf32>
    %111 = vector.multi_reduction <maximumf>, %110, %cst_36 [2] : vector<2x8x8xf32> to vector<2x8xf32>
    %112 = vector.shape_cast %111 : vector<2x8xf32> to vector<2x8x1xf32>
    %113 = vector.broadcast %112 : vector<2x8x1xf32> to vector<2x8x8xf32>
    %114 = arith.subf %110, %113 : vector<2x8x8xf32>
    %115 = math.exp %114 : vector<2x8x8xf32>
    %cst_37 = arith.constant dense<0.000000e+00> : vector<2x8xf32>
    %116 = vector.multi_reduction <add>, %115, %cst_37 [2] : vector<2x8x8xf32> to vector<2x8xf32>
    %117 = vector.shape_cast %116 : vector<2x8xf32> to vector<2x8x1xf32>
    %118 = tpu.reciprocal %117 {approx = true} : vector<2x8x1xf32> -> vector<2x8x1xf32>
    %119 = arith.truncf %115 : vector<2x8x8xf32> to vector<2x8x8xbf16>
    %120 = vector.extract_strided_slice %56 {offsets = [0, 0, 96], sizes = [2, 8, 32], strides = [1, 1, 1]} : vector<2x8x128xbf16> to vector<2x8x32xbf16>
    "tpu.trace_start"() <{level = 10 : i32, message = "bqk,bkd->bqd"}> : () -> ()
    %cst_38 = arith.constant dense<0.000000e+00> : vector<2x8x32xf32>
    %121 = tpu.matmul %119, %120, %cst_38 {dimension_numbers = #tpu.dot_dimension_numbers<[2], [1], [1], [2], [0, 0, 0, 1, 1, 2], [0], [0]>} : vector<2x8x8xbf16>, vector<2x8x32xbf16>, vector<2x8x32xf32> -> vector<2x8x32xf32>
    "tpu.trace_stop"() : () -> ()
    %122 = vector.broadcast %118 : vector<2x8x1xf32> to vector<2x8x32xf32>
    %123 = arith.mulf %121, %122 : vector<2x8x32xf32>
    %c0_39 = arith.constant 0 : index
    %c0_40 = arith.constant 0 : index
    %c96 = arith.constant 96 : index
    %124 = vector.load %arg17[%c0_39, %c0_40, %c96] : memref<2x8x128xf32, #tpu.memory_space<vmem>>, vector<2x8x32xf32>
    tpu.vector_store %arg17[%c0_39, %c0_40, %c96], %123 {strides = array<i32>} : memref<2x8x128xf32, #tpu.memory_space<vmem>>, vector<2x8x32xf32>,
    %c0_41 = arith.constant 0 : index
    %c0_42 = arith.constant 0 : index
    %c0_43 = arith.constant 0 : index
    %125 = vector.load %arg17[%c0_41, %c0_42, %c0_43] : memref<2x8x128xf32, #tpu.memory_space<vmem>>, vector<2x8x128xf32>
    %126 = vector.shape_cast %125 : vector<2x8x128xf32> to vector<16x128xf32>
    %127 = arith.truncf %126 : vector<16x128xf32> to vector<16x128xbf16>
    %c0_44 = arith.constant 0 : index
    %c0_45 = arith.constant 0 : index
    %c0_46 = arith.constant 0 : index
    %128 = vector.load %arg8[%c0_44, %c0_45, %c0_46] : memref<1x128x128xbf16, #tpu.memory_space<vmem>>, vector<1x128x128xbf16>
    %129 = vector.shape_cast %128 : vector<1x128x128xbf16> to vector<128x128xbf16>
    %cst_47 = arith.constant dense<0.000000e+00> : vector<16x128xf32>
    %130 = tpu.matmul %127, %129, %cst_47 {dimension_numbers = #tpu.dot_dimension_numbers<[1], [0], [0], [1], [0, 0, 1, 1], [], []>} : vector<16x128xbf16>, vector<128x128xbf16>, vector<16x128xf32> -> vector<16x128xf32>
    %131 = vector.broadcast %10 : vector<1x128xf32> to vector<16x128xf32>
    %132 = arith.addf %130, %131 : vector<16x128xf32>
    %133 = arith.addf %22, %132 : vector<16x128xf32>
    %cst_48 = arith.constant dense<0.000000e+00> : vector<16xf32>
    %134 = vector.multi_reduction <add>, %133, %cst_48 [1] : vector<16x128xf32> to vector<16xf32>
    %135 = vector.shape_cast %134 : vector<16xf32> to vector<16x1xf32>
    %cst_49 = arith.constant 3.125000e-02 : f32
    %136 = vector.broadcast %cst_49 : f32 to vector<16x1xf32>
    %137 = arith.mulf %135, %136 : vector<16x1xf32>
    %138 = vector.broadcast %137 : vector<16x1xf32> to vector<16x128xf32>
    %139 = vector.broadcast %4 : vector<1x128xf32> to vector<16x128xf32>
    %140 = arith.mulf %138, %139 : vector<16x128xf32>
    %141 = arith.subf %133, %140 : vector<16x128xf32>
    %142 = arith.mulf %141, %141 : vector<16x128xf32>
    %cst_50 = arith.constant dense<0.000000e+00> : vector<16xf32>
    %143 = vector.multi_reduction <add>, %142, %cst_50 [1] : vector<16x128xf32> to vector<16xf32>
    %144 = vector.shape_cast %143 : vector<16xf32> to vector<16x1xf32>
    %cst_51 = arith.constant 3.125000e-02 : f32
    %145 = vector.broadcast %cst_51 : f32 to vector<16x1xf32>
    %146 = arith.mulf %144, %145 : vector<16x1xf32>
    %cst_52 = arith.constant 9.99999974E-6 : f32
    %147 = vector.broadcast %cst_52 : f32 to vector<16x1xf32>
    %148 = arith.addf %146, %147 : vector<16x1xf32>
    %149 = math.rsqrt %148 : vector<16x1xf32>
    %150 = vector.broadcast %149 : vector<16x1xf32> to vector<16x128xf32>
    %151 = arith.mulf %141, %150 : vector<16x128xf32>
    %152 = vector.broadcast %12 : vector<1x128xf32> to vector<16x128xf32>
    %153 = arith.mulf %151, %152 : vector<16x128xf32>
    %154 = vector.broadcast %13 : vector<1x128xf32> to vector<16x128xf32>
    %155 = arith.addf %153, %154 : vector<16x128xf32>
    %156 = arith.truncf %155 : vector<16x128xf32> to vector<16x128xbf16>
    %c0_53 = arith.constant 0 : index
    %c0_54 = arith.constant 0 : index
    %c0_55 = arith.constant 0 : index
    %157 = vector.load %arg9[%c0_53, %c0_54, %c0_55] : memref<1x128x128xbf16, #tpu.memory_space<vmem>>, vector<1x128x128xbf16>
    %158 = vector.shape_cast %157 : vector<1x128x128xbf16> to vector<128x128xbf16>
    %cst_56 = arith.constant dense<0.000000e+00> : vector<16x128xf32>
    %159 = tpu.matmul %156, %158, %cst_56 {dimension_numbers = #tpu.dot_dimension_numbers<[1], [0], [0], [1], [0, 0, 1, 1], [], []>} : vector<16x128xbf16>, vector<128x128xbf16>, vector<16x128xf32> -> vector<16x128xf32>
    %160 = vector.broadcast %17 : vector<1x128xf32> to vector<16x128xf32>
    %161 = arith.addf %159, %160 : vector<16x128xf32>
    %cst_57 = arith.constant 0.000000e+00 : f32
    %162 = vector.broadcast %cst_57 : f32 to vector<16x128xf32>
    %163 = arith.maximumf %161, %162 : vector<16x128xf32>
    %164 = arith.truncf %163 : vector<16x128xf32> to vector<16x128xbf16>
    %c0_58 = arith.constant 0 : index
    %c0_59 = arith.constant 0 : index
    %c0_60 = arith.constant 0 : index
    %165 = vector.load %arg10[%c0_58, %c0_59, %c0_60] : memref<1x128x128xbf16, #tpu.memory_space<vmem>>, vector<1x128x128xbf16>
    %166 = vector.shape_cast %165 : vector<1x128x128xbf16> to vector<128x128xbf16>
    %cst_61 = arith.constant dense<0.000000e+00> : vector<16x128xf32>
    %167 = tpu.matmul %164, %166, %cst_61 {dimension_numbers = #tpu.dot_dimension_numbers<[1], [0], [0], [1], [0, 0, 1, 1], [], []>} : vector<16x128xbf16>, vector<128x128xbf16>, vector<16x128xf32> -> vector<16x128xf32>
    %168 = vector.broadcast %11 : vector<1x128xf32> to vector<16x128xf32>
    %169 = arith.addf %167, %168 : vector<16x128xf32>
    %170 = arith.addf %155, %169 : vector<16x128xf32>
    %cst_62 = arith.constant dense<0.000000e+00> : vector<16xf32>
    %171 = vector.multi_reduction <add>, %170, %cst_62 [1] : vector<16x128xf32> to vector<16xf32>
    %172 = vector.shape_cast %171 : vector<16xf32> to vector<16x1xf32>
    %cst_63 = arith.constant 3.125000e-02 : f32
    %173 = vector.broadcast %cst_63 : f32 to vector<16x1xf32>
    %174 = arith.mulf %172, %173 : vector<16x1xf32>
    %175 = vector.broadcast %174 : vector<16x1xf32> to vector<16x128xf32>
    %176 = vector.broadcast %4 : vector<1x128xf32> to vector<16x128xf32>
    %177 = arith.mulf %175, %176 : vector<16x128xf32>
    %178 = arith.subf %170, %177 : vector<16x128xf32>
    %179 = arith.mulf %178, %178 : vector<16x128xf32>
    %cst_64 = arith.constant dense<0.000000e+00> : vector<16xf32>
    %180 = vector.multi_reduction <add>, %179, %cst_64 [1] : vector<16x128xf32> to vector<16xf32>
    %181 = vector.shape_cast %180 : vector<16xf32> to vector<16x1xf32>
    %cst_65 = arith.constant 3.125000e-02 : f32
    %182 = vector.broadcast %cst_65 : f32 to vector<16x1xf32>
    %183 = arith.mulf %181, %182 : vector<16x1xf32>
    %cst_66 = arith.constant 9.99999974E-6 : f32
    %184 = vector.broadcast %cst_66 : f32 to vector<16x1xf32>
    %185 = arith.addf %183, %184 : vector<16x1xf32>
    %186 = math.rsqrt %185 : vector<16x1xf32>
    %187 = vector.broadcast %186 : vector<16x1xf32> to vector<16x128xf32>
    %188 = arith.mulf %178, %187 : vector<16x128xf32>
    %189 = vector.broadcast %14 : vector<1x128xf32> to vector<16x128xf32>
    %190 = arith.mulf %188, %189 : vector<16x128xf32>
    %191 = vector.broadcast %15 : vector<1x128xf32> to vector<16x128xf32>
    %192 = arith.addf %190, %191 : vector<16x128xf32>
    %193 = vector.shape_cast %192 : vector<16x128xf32> to vector<2x8x128xf32>
    %c0_67 = arith.constant 0 : index
    %c0_68 = arith.constant 0 : index
    %c0_69 = arith.constant 0 : index
    %194 = vector.load %arg16[%c0_67, %c0_68, %c0_69] : memref<2x8x128xf32, #tpu.memory_space<vmem>>, vector<2x8x128xf32>
    tpu.vector_store %arg16[%c0_67, %c0_68, %c0_69], %193 {strides = array<i32>} : memref<2x8x128xf32, #tpu.memory_space<vmem>>, vector<2x8x128xf32>,
    %c1_i32 = arith.constant 1 : i32
    %195 = arith.cmpi eq, %arg1, %c1_i32 : i32
    %196 = arith.extui %195 : i1 to i32
    %c0_i32_70 = arith.constant 0 : i32
    %197 = arith.cmpi ne, %196, %c0_i32_70 : i32
    scf.if %197 {
      %198 = arith.truncf %192 : vector<16x128xf32> to vector<16x128xbf16>
      %c0_71 = arith.constant 0 : index
      %c0_72 = arith.constant 0 : index
      %199 = vector.load %arg13[%c0_71, %c0_72] : memref<128x128xbf16, #tpu.memory_space<vmem>>, vector<128x128xbf16>
      %cst_73 = arith.constant dense<0.000000e+00> : vector<16x128xf32>
      %200 = tpu.matmul %198, %199, %cst_73 {dimension_numbers = #tpu.dot_dimension_numbers<[1], [0], [0], [1], [0, 0, 1, 1], [], []>} : vector<16x128xbf16>, vector<128x128xbf16>, vector<16x128xf32> -> vector<16x128xf32>
      %c0_74 = arith.constant 0 : index
      %c0_75 = arith.constant 0 : index
      %201 = vector.load %arg14[%c0_74, %c0_75] : memref<1x128xf32, #tpu.memory_space<vmem>>, vector<1x128xf32>
      %202 = vector.broadcast %201 : vector<1x128xf32> to vector<16x128xf32>
      %203 = arith.addf %200, %202 : vector<16x128xf32>
      %204 = vector.shape_cast %203 : vector<16x128xf32> to vector<2x8x128xf32>
      %c0_76 = arith.constant 0 : index
      %c0_77 = arith.constant 0 : index
      %c0_78 = arith.constant 0 : index
      %205 = vector.load %arg15[%c0_76, %c0_77, %c0_78] : memref<2x8x128xf32, #tpu.memory_space<vmem>>, vector<2x8x128xf32>
      tpu.vector_store %arg15[%c0_76, %c0_77, %c0_78], %204 {strides = array<i32>} : memref<2x8x128xf32, #tpu.memory_space<vmem>>, vector<2x8x128xf32>,
    } else {
    }
    return
  }
  func.func @transform_0(%arg0: i32, %arg1: i32) -> (i32, i32, i32) {
    %c0_i32 = arith.constant 0 : i32
    %c0_i32_0 = arith.constant 0 : i32
    %c0_i32_1 = arith.constant 0 : i32
    return %arg0, %c0_i32, %c0_i32_0 : i32, i32, i32
  }
  func.func @transform_1(%arg0: i32, %arg1: i32) -> (i32, i32, i32) {
    %c0_i32 = arith.constant 0 : i32
    %c0_i32_0 = arith.constant 0 : i32
    %c0_i32_1 = arith.constant 0 : i32
    return %arg0, %c0_i32, %c0_i32_0 : i32, i32, i32
  }
  func.func @transform_2(%arg0: i32, %arg1: i32) -> (i32, i32) {
    %c0_i32 = arith.constant 0 : i32
    %c0_i32_0 = arith.constant 0 : i32
    %c0_i32_1 = arith.constant 0 : i32
    return %c0_i32, %c0_i32_0 : i32, i32
  }
  func.func @transform_3(%arg0: i32, %arg1: i32) -> (i32, i32) {
    %c0_i32 = arith.constant 0 : i32
    %c0_i32_0 = arith.constant 0 : i32
    %c0_i32_1 = arith.constant 0 : i32
    return %c0_i32, %c0_i32_0 : i32, i32
  }
  func.func @transform_4(%arg0: i32, %arg1: i32) -> (i32, i32) {
    %c0_i32 = arith.constant 0 : i32
    %c0_i32_0 = arith.constant 0 : i32
    %c0_i32_1 = arith.constant 0 : i32
    return %c0_i32, %c0_i32_0 : i32, i32
  }
  func.func @transform_5(%arg0: i32, %arg1: i32) -> (i32, i32, i32) {
    %c0_i32 = arith.constant 0 : i32
    %c0_i32_0 = arith.constant 0 : i32
    %c0_i32_1 = arith.constant 0 : i32
    return %arg1, %c0_i32, %c0_i32_0 : i32, i32, i32
  }
  func.func @transform_6(%arg0: i32, %arg1: i32) -> (i32, i32, i32) {
    %c0_i32 = arith.constant 0 : i32
    %c0_i32_0 = arith.constant 0 : i32
    %c0_i32_1 = arith.constant 0 : i32
    return %arg1, %c0_i32, %c0_i32_0 : i32, i32, i32
  }
  func.func @transform_7(%arg0: i32, %arg1: i32) -> (i32, i32, i32) {
    %c0_i32 = arith.constant 0 : i32
    %c0_i32_0 = arith.constant 0 : i32
    %c0_i32_1 = arith.constant 0 : i32
    return %arg1, %c0_i32, %c0_i32_0 : i32, i32, i32
  }
  func.func @transform_8(%arg0: i32, %arg1: i32) -> (i32, i32, i32) {
    %c0_i32 = arith.constant 0 : i32
    %c0_i32_0 = arith.constant 0 : i32
    %c0_i32_1 = arith.constant 0 : i32
    return %arg1, %c0_i32, %c0_i32_0 : i32, i32, i32
  }
  func.func @transform_9(%arg0: i32, %arg1: i32) -> (i32, i32, i32) {
    %c0_i32 = arith.constant 0 : i32
    %c0_i32_0 = arith.constant 0 : i32
    %c0_i32_1 = arith.constant 0 : i32
    return %arg1, %c0_i32, %c0_i32_0 : i32, i32, i32
  }
  func.func @transform_10(%arg0: i32, %arg1: i32) -> (i32, i32, i32) {
    %c0_i32 = arith.constant 0 : i32
    %c0_i32_0 = arith.constant 0 : i32
    %c0_i32_1 = arith.constant 0 : i32
    return %arg1, %c0_i32, %c0_i32_0 : i32, i32, i32
  }
  func.func @transform_11(%arg0: i32, %arg1: i32) -> (i32, i32) {
    %c0_i32 = arith.constant 0 : i32
    %c0_i32_0 = arith.constant 0 : i32
    %c0_i32_1 = arith.constant 0 : i32
    return %c0_i32, %c0_i32_0 : i32, i32
  }
  func.func @transform_12(%arg0: i32, %arg1: i32) -> (i32, i32) {
    %c0_i32 = arith.constant 0 : i32
    %c0_i32_0 = arith.constant 0 : i32
    %c0_i32_1 = arith.constant 0 : i32
    return %c0_i32, %c0_i32_0 : i32, i32
  }
  func.func @transform_13(%arg0: i32, %arg1: i32) -> (i32, i32, i32) {
    %c0_i32 = arith.constant 0 : i32
    %c0_i32_0 = arith.constant 0 : i32
    %c0_i32_1 = arith.constant 0 : i32
    return %arg0, %c0_i32, %c0_i32_0 : i32, i32, i32
  }
}

</mosaic_0001>

<llo_original>
// kernel: tpu_custom_call.1
$region0: #{tpu_custom_call.1}
  #allocation0 [shape = 'u32[]', space=smem, size = 0x4, offset = 0x4, fixed_abs, tag = 'smem constant byte address 0x4 - core index']
  #allocation1 [shape = 'u32[72,128]{1,0:T(1,128)}', space=vmem, size = 0x9000, scoped, tag = 'internal scratch']
  #allocation2 [shape = 'f32[2,8,128]{2,1,0:T(8,128)}', space=vmem, size = 0x2000, scoped, tag = 'scratch operand']
  #allocation3 [shape = 'f32[2,8,128]{2,1,0:T(8,128)}', space=vmem, size = 0x2000, scoped, tag = 'scratch operand']
  %s0 = inlined_call_operand.vmem [shape: bf16[2,8,128], index: 0, kind: input, shape index: {}]
  %s1 = inlined_call_operand.vmem [shape: bf16[2,8,128], index: 1, kind: input, shape index: {}]
  %s2 = inlined_call_operand.hbm [shape: bf16[128,128], index: 2, kind: input, shape index: {}]
  %s3 = inlined_call_operand.vmem [shape: f32[1,128], index: 3, kind: input, shape index: {}]
  %s4 = inlined_call_operand.vmem [shape: bf16[8,128], index: 4, kind: input, shape index: {}]
  %s5 = inlined_call_operand.hbm [shape: bf16[2,128,384], index: 5, kind: input, shape index: {}]
  %s6 = inlined_call_operand.hbm [shape: bf16[2,128,128], index: 6, kind: input, shape index: {}]
  %s7 = inlined_call_operand.hbm [shape: bf16[2,128,128], index: 7, kind: input, shape index: {}]
  %s8 = inlined_call_operand.hbm [shape: bf16[2,128,128], index: 8, kind: input, shape index: {}]
  %s9 = inlined_call_operand.vmem [shape: f32[2,9,128], index: 9, kind: input, shape index: {}]
  %s10 = inlined_call_operand.vmem [shape: f32[2,1,128], index: 10, kind: input, shape index: {}]
  %s11 = inlined_call_operand.hbm [shape: bf16[128,128], index: 11, kind: input, shape index: {}]
  %s12 = inlined_call_operand.vmem [shape: f32[1,128], index: 12, kind: input, shape index: {}]
  %s13 = inlined_call_operand.hbm [shape: f32[2,8,128], index: 13, kind: output, shape index: {}]
  %s14 = sld [smem:[#allocation0]]
  $region117: #{tpu_custom_call.1} parent=0
    _
  %s16 = ssub.s32 1, %s14
  %s17 = scalar_select 0, %s16, %s14
  $region1: #{tpu_custom_call.1} parent=0
    #allocation4 [shape = 'u8[32768]{0}', space=vmem, size = 0x8000, scoped, tag = 'input window, operand 2, single buffered']
    #allocation5 [shape = 's32[2]{0}', space=sflag, size = 0x8, scoped, tag = 'scoped memory for tpu_custom_call.1']
    #allocation6 [shape = 's32[2]{0}', space=sflag, size = 0x8, scoped, tag = 'scoped memory for tpu_custom_call.1']
    #allocation7 [shape = 'u8[196608]{0}', space=vmem, size = 0x30000, scoped, tag = 'input window, operand 5']
    #allocation8 [shape = 's32[2]{0}', space=sflag, size = 0x8, scoped, tag = 'scoped memory for tpu_custom_call.1']
    #allocation9 [shape = 'u8[65536]{0}', space=vmem, size = 0x10000, scoped, tag = 'input window, operand 6']
    #allocation10 [shape = 'u8[65536]{0}', space=vmem, size = 0x10000, scoped, tag = 'input window, operand 7']
    #allocation11 [shape = 's32[2]{0}', space=sflag, size = 0x8, scoped, tag = 'scoped memory for tpu_custom_call.1']
    #allocation12 [shape = 'u8[65536]{0}', space=vmem, size = 0x10000, scoped, tag = 'input window, operand 8']
    #allocation13 [shape = 'u8[32768]{0}', space=vmem, size = 0x8000, scoped, tag = 'input window, operand 11, single buffered']
    #allocation14 [shape = 's32[1]{0}', space=sflag, size = 0x4, scoped, tag = 'scoped memory for tpu_custom_call.1']
    #allocation15 [shape = 'u8[8192]{0}', space=vmem, size = 0x2000, scoped, tag = 'output window, operand 0, single buffered']
    %18 = vsyncpa [#allocation5], 0
    %19 = vsyncpa [#allocation8], 0
    %s20 = scalar_lea.sflag [#allocation8], 1
    %21 = vsyncpa %s20, 0
    %22 = vsyncpa [#allocation11], 0
    %s23 = scalar_lea.sflag [#allocation11], 1
    %24 = vsyncpa %s23, 0
    %25 = vsyncpa [#allocation14], 0
    %26 = vsyncpa [#allocation6], 0
    loop: start=0, step=1, limit=4
    $region2: #{tpu_custom_call.1} parent=1 // loop_pre_header
      _
    $region3: #{tpu_custom_call.1} parent=1 // loop_header
      %s28 = sphi 0, %s32
      %p29 = scmp.ge.s32.totalorder %s28, 4
      %s35 = sphi 0, %s47
      %s36 = sphi 0, %s43
      %s37 = sphi 0, %s35
      %s38 = sphi 0, %s36
      %s39 = sphi 0, %s37
      %s40 = sphi 0, %s38
      %s50 = sphi 0, %s52
      %s53 = sphi 0, %s50
      %s54 = sphi 0, %s53
      %s70 = sphi 0, %s54
      %s76 = sphi 0, %s78
      %s79 = sphi 0, %s76
      %s80 = sphi 0, %s79
      %s96 = sphi 0, %s80
      %s100 = sphi 0, %s100
      %s102 = sphi 0, %s100
      %s103 = sphi 0, %s102
      %s117 = sphi 0, %s103
      %s121 = sphi 0, %s121
      %s123 = sphi 0, %s121
      %s124 = sphi 0, %s123
      %s138 = sphi 0, %s124
      %s142 = sphi 0, %s142
      %s144 = sphi 0, %s142
      %s145 = sphi 0, %s144
      %s159 = sphi 0, %s145
      %s165 = sphi 0, %s167
      %s168 = sphi 0, %s165
      %s169 = sphi 0, %s168
      %s185 = sphi 0, %s169
      %s191 = sphi 0, %s193
      %s194 = sphi 0, %s191
      %s195 = sphi 0, %s194
      %s211 = sphi 0, %s195
      %s217 = sphi 0, %s219
      %s220 = sphi 0, %s217
      %s221 = sphi 0, %s220
      %s237 = sphi 0, %s221
      %s243 = sphi 0, %s245
      %s246 = sphi 0, %s243
      %s247 = sphi 0, %s246
      %s263 = sphi 0, %s247
      %s269 = sphi 0, %s271
      %s272 = sphi 0, %s269
      %s273 = sphi 0, %s272
      %s289 = sphi 0, %s273
      %s295 = sphi 0, %s297
      %s298 = sphi 0, %s295
      %s299 = sphi 0, %s298
      %s315 = sphi 0, %s299
      %s319 = sphi 0, %s319
      %s321 = sphi 0, %s319
      %s322 = sphi 0, %s321
      %s336 = sphi 0, %s322
      %s340 = sphi 0, %s340
      %s342 = sphi 0, %s340
      %s343 = sphi 0, %s342
      %s357 = sphi 0, %s343
      %s363 = sphi 0, %s365
      %s366 = sphi 0, %s363
      %s367 = sphi 0, %s366
      %s383 = sphi 0, %s367
    $region4: #{tpu_custom_call.1} parent=1 // loop_header_branch
      %31 = sbr.rel (%p29) target = $region8
    $region5: #{tpu_custom_call.1} parent=1 // loop_body
      %s33 = ssub.s32 %s28, 1
      %s34 = ssub.s32 %s28, 2
      %s41 = sadd.s32 1, %s36
      %p42 = scmp.ge.s32.totalorder %s41, 2
      %s43 = scalar_select %p42, 0, %s41
      %s44 = sadd.s32 1, %s35
      %s45 = scalar_select %p42, %s44, %s35
      %p46 = scmp.ge.s32.totalorder %s45, 1
      %s47 = scalar_select %p46, 0, %s45
      %s48 = ssub.s32 %s35, %s47
      %p49 = scmp.eq.s32.totalorder %s48, 0
      %s51 = sadd.s32 %s50, 1
      %s52 = scalar_select %p49, %s50, %s51
      %p55 = pneg %p49
      %p56 = scmp.eq.s32.totalorder %s28, 1
      %p57 = por %p55, %p56
      %p58 = scmp.ne.s32.totalorder %s50, %s53
      %p59 = scmp.eq.s32.totalorder %s28, 0
      %p60 = por %p58, %p59
      %p61 = scmp.ne.s32.totalorder %s50, %s53
      %p62 = scmp.eq.s32.totalorder %s33, 1
      %p63 = por %p61, %p62
      %p64 = scmp.ne.s32.totalorder %s53, %s54
      %p65 = scmp.eq.s32.totalorder %s33, 0
      %p66 = por %p64, %p65
      %p67 = scmp.ne.s32.totalorder %s53, %s54
      %p68 = scmp.eq.s32.totalorder %s34, 1
      %p69 = por %p67, %p68
      %p71 = scmp.ne.s32.totalorder %s54, %s70
      %p72 = scmp.eq.s32.totalorder %s34, 0
      %p73 = por %p71, %p72
      %s74 = ssub.s32 %s35, %s47
      %p75 = scmp.eq.s32.totalorder %s74, 0
      %s77 = sadd.s32 %s76, 1
      %s78 = scalar_select %p75, %s76, %s77
      %p81 = pneg %p75
      %p82 = scmp.eq.s32.totalorder %s28, 1
      %p83 = por %p81, %p82
      %p84 = scmp.ne.s32.totalorder %s76, %s79
      %p85 = scmp.eq.s32.totalorder %s28, 0
      %p86 = por %p84, %p85
      %p87 = scmp.ne.s32.totalorder %s76, %s79
      %p88 = scmp.eq.s32.totalorder %s33, 1
      %p89 = por %p87, %p88
      %p90 = scmp.ne.s32.totalorder %s79, %s80
      %p91 = scmp.eq.s32.totalorder %s33, 0
      %p92 = por %p90, %p91
      %p93 = scmp.ne.s32.totalorder %s79, %s80
      %p94 = scmp.eq.s32.totalorder %s34, 1
      %p95 = por %p93, %p94
      %p97 = scmp.ne.s32.totalorder %s80, %s96
      %p98 = scmp.eq.s32.totalorder %s34, 0
      %p99 = por %p97, %p98
      %s101 = sadd.s32 %s100, 1
      %p104 = scmp.eq.s32.totalorder %s28, 1
      %p105 = scmp.ne.s32.totalorder %s100, %s102
      %p106 = scmp.eq.s32.totalorder %s28, 0
      %p107 = por %p105, %p106
      %p108 = scmp.ne.s32.totalorder %s100, %s102
      %p109 = scmp.eq.s32.totalorder %s33, 1
      %p110 = por %p108, %p109
      %p111 = scmp.ne.s32.totalorder %s102, %s103
      %p112 = scmp.eq.s32.totalorder %s33, 0
      %p113 = por %p111, %p112
      %p114 = scmp.ne.s32.totalorder %s102, %s103
      %p115 = scmp.eq.s32.totalorder %s34, 1
      %p116 = por %p114, %p115
      %p118 = scmp.ne.s32.totalorder %s103, %s117
      %p119 = scmp.eq.s32.totalorder %s34, 0
      %p120 = por %p118, %p119
      %s122 = sadd.s32 %s121, 1
      %p125 = scmp.eq.s32.totalorder %s28, 1
      %p126 = scmp.ne.s32.totalorder %s121, %s123
      %p127 = scmp.eq.s32.totalorder %s28, 0
      %p128 = por %p126, %p127
      %p129 = scmp.ne.s32.totalorder %s121, %s123
      %p130 = scmp.eq.s32.totalorder %s33, 1
      %p131 = por %p129, %p130
      %p132 = scmp.ne.s32.totalorder %s123, %s124
      %p133 = scmp.eq.s32.totalorder %s33, 0
      %p134 = por %p132, %p133
      %p135 = scmp.ne.s32.totalorder %s123, %s124
      %p136 = scmp.eq.s32.totalorder %s34, 1
      %p137 = por %p135, %p136
      %p139 = scmp.ne.s32.totalorder %s124, %s138
      %p140 = scmp.eq.s32.totalorder %s34, 0
      %p141 = por %p139, %p140
      %s143 = sadd.s32 %s142, 1
      %p146 = scmp.eq.s32.totalorder %s28, 1
      %p147 = scmp.ne.s32.totalorder %s142, %s144
      %p148 = scmp.eq.s32.totalorder %s28, 0
      %p149 = por %p147, %p148
      %p150 = scmp.ne.s32.totalorder %s142, %s144
      %p151 = scmp.eq.s32.totalorder %s33, 1
      %p152 = por %p150, %p151
      %p153 = scmp.ne.s32.totalorder %s144, %s145
      %p154 = scmp.eq.s32.totalorder %s33, 0
      %p155 = por %p153, %p154
      %p156 = scmp.ne.s32.totalorder %s144, %s145
      %p157 = scmp.eq.s32.totalorder %s34, 1
      %p158 = por %p156, %p157
      %p160 = scmp.ne.s32.totalorder %s145, %s159
      %p161 = scmp.eq.s32.totalorder %s34, 0
      %p162 = por %p160, %p161
      %s163 = ssub.s32 %s36, %s43
      %p164 = scmp.eq.s32.totalorder %s163, 0
      %s166 = sadd.s32 %s165, 1
      %s167 = scalar_select %p164, %s165, %s166
      %p170 = pneg %p164
      %p171 = scmp.eq.s32.totalorder %s28, 1
      %p172 = por %p170, %p171
      %p173 = scmp.ne.s32.totalorder %s165, %s168
      %p174 = scmp.eq.s32.totalorder %s28, 0
      %p175 = por %p173, %p174
      %p176 = scmp.ne.s32.totalorder %s165, %s168
      %p177 = scmp.eq.s32.totalorder %s33, 1
      %p178 = por %p176, %p177
      %p179 = scmp.ne.s32.totalorder %s168, %s169
      %p180 = scmp.eq.s32.totalorder %s33, 0
      %p181 = por %p179, %p180
      %p182 = scmp.ne.s32.totalorder %s168, %s169
      %p183 = scmp.eq.s32.totalorder %s34, 1
      %p184 = por %p182, %p183
      %p186 = scmp.ne.s32.totalorder %s169, %s185
      %p187 = scmp.eq.s32.totalorder %s34, 0
      %p188 = por %p186, %p187
      %s189 = ssub.s32 %s36, %s43
      %p190 = scmp.eq.s32.totalorder %s189, 0
      %s192 = sadd.s32 %s191, 1
      %s193 = scalar_select %p190, %s191, %s192
      %p196 = pneg %p190
      %p197 = scmp.eq.s32.totalorder %s28, 1
      %p198 = por %p196, %p197
      %p199 = scmp.ne.s32.totalorder %s191, %s194
      %p200 = scmp.eq.s32.totalorder %s28, 0
      %p201 = por %p199, %p200
      %p202 = scmp.ne.s32.totalorder %s191, %s194
      %p203 = scmp.eq.s32.totalorder %s33, 1
      %p204 = por %p202, %p203
      %p205 = scmp.ne.s32.totalorder %s194, %s195
      %p206 = scmp.eq.s32.totalorder %s33, 0
      %p207 = por %p205, %p206
      %p208 = scmp.ne.s32.totalorder %s194, %s195
      %p209 = scmp.eq.s32.totalorder %s34, 1
      %p210 = por %p208, %p209
      %p212 = scmp.ne.s32.totalorder %s195, %s211
      %p213 = scmp.eq.s32.totalorder %s34, 0
      %p214 = por %p212, %p213
      %s215 = ssub.s32 %s36, %s43
      %p216 = scmp.eq.s32.totalorder %s215, 0
      %s218 = sadd.s32 %s217, 1
      %s219 = scalar_select %p216, %s217, %s218
      %p222 = pneg %p216
      %p223 = scmp.eq.s32.totalorder %s28, 1
      %p224 = por %p222, %p223
      %p225 = scmp.ne.s32.totalorder %s217, %s220
      %p226 = scmp.eq.s32.totalorder %s28, 0
      %p227 = por %p225, %p226
      %p228 = scmp.ne.s32.totalorder %s217, %s220
      %p229 = scmp.eq.s32.totalorder %s33, 1
      %p230 = por %p228, %p229
      %p231 = scmp.ne.s32.totalorder %s220, %s221
      %p232 = scmp.eq.s32.totalorder %s33, 0
      %p233 = por %p231, %p232
      %p234 = scmp.ne.s32.totalorder %s220, %s221
      %p235 = scmp.eq.s32.totalorder %s34, 1
      %p236 = por %p234, %p235
      %p238 = scmp.ne.s32.totalorder %s221, %s237
      %p239 = scmp.eq.s32.totalorder %s34, 0
      %p240 = por %p238, %p239
      %s241 = ssub.s32 %s36, %s43
      %p242 = scmp.eq.s32.totalorder %s241, 0
      %s244 = sadd.s32 %s243, 1
      %s245 = scalar_select %p242, %s243, %s244
      %p248 = pneg %p242
      %p249 = scmp.eq.s32.totalorder %s28, 1
      %p250 = por %p248, %p249
      %p251 = scmp.ne.s32.totalorder %s243, %s246
      %p252 = scmp.eq.s32.totalorder %s28, 0
      %p253 = por %p251, %p252
      %p254 = scmp.ne.s32.totalorder %s243, %s246
      %p255 = scmp.eq.s32.totalorder %s33, 1
      %p256 = por %p254, %p255
      %p257 = scmp.ne.s32.totalorder %s246, %s247
      %p258 = scmp.eq.s32.totalorder %s33, 0
      %p259 = por %p257, %p258
      %p260 = scmp.ne.s32.totalorder %s246, %s247
      %p261 = scmp.eq.s32.totalorder %s34, 1
      %p262 = por %p260, %p261
      %p264 = scmp.ne.s32.totalorder %s247, %s263
      %p265 = scmp.eq.s32.totalorder %s34, 0
      %p266 = por %p264, %p265
      %s267 = ssub.s32 %s36, %s43
      %p268 = scmp.eq.s32.totalorder %s267, 0
      %s270 = sadd.s32 %s269, 1
      %s271 = scalar_select %p268, %s269, %s270
      %p274 = pneg %p268
      %p275 = scmp.eq.s32.totalorder %s28, 1
      %p276 = por %p274, %p275
      %p277 = scmp.ne.s32.totalorder %s269, %s272
      %p278 = scmp.eq.s32.totalorder %s28, 0
      %p279 = por %p277, %p278
      %p280 = scmp.ne.s32.totalorder %s269, %s272
      %p281 = scmp.eq.s32.totalorder %s33, 1
      %p282 = por %p280, %p281
      %p283 = scmp.ne.s32.totalorder %s272, %s273
      %p284 = scmp.eq.s32.totalorder %s33, 0
      %p285 = por %p283, %p284
      %p286 = scmp.ne.s32.totalorder %s272, %s273
      %p287 = scmp.eq.s32.totalorder %s34, 1
      %p288 = por %p286, %p287
      %p290 = scmp.ne.s32.totalorder %s273, %s289
      %p291 = scmp.eq.s32.totalorder %s34, 0
      %p292 = por %p290, %p291
      %s293 = ssub.s32 %s36, %s43
      %p294 = scmp.eq.s32.totalorder %s293, 0
      %s296 = sadd.s32 %s295, 1
      %s297 = scalar_select %p294, %s295, %s296
      %p300 = pneg %p294
      %p301 = scmp.eq.s32.totalorder %s28, 1
      %p302 = por %p300, %p301
      %p303 = scmp.ne.s32.totalorder %s295, %s298
      %p304 = scmp.eq.s32.totalorder %s28, 0
      %p305 = por %p303, %p304
      %p306 = scmp.ne.s32.totalorder %s295, %s298
      %p307 = scmp.eq.s32.totalorder %s33, 1
      %p308 = por %p306, %p307
      %p309 = scmp.ne.s32.totalorder %s298, %s299
      %p310 = scmp.eq.s32.totalorder %s33, 0
      %p311 = por %p309, %p310
      %p312 = scmp.ne.s32.totalorder %s298, %s299
      %p313 = scmp.eq.s32.totalorder %s34, 1
      %p314 = por %p312, %p313
      %p316 = scmp.ne.s32.totalorder %s299, %s315
      %p317 = scmp.eq.s32.totalorder %s34, 0
      %p318 = por %p316, %p317
      %s320 = sadd.s32 %s319, 1
      %p323 = scmp.eq.s32.totalorder %s28, 1
      %p324 = scmp.ne.s32.totalorder %s319, %s321
      %p325 = scmp.eq.s32.totalorder %s28, 0
      %p326 = por %p324, %p325
      %p327 = scmp.ne.s32.totalorder %s319, %s321
      %p328 = scmp.eq.s32.totalorder %s33, 1
      %p329 = por %p327, %p328
      %p330 = scmp.ne.s32.totalorder %s321, %s322
      %p331 = scmp.eq.s32.totalorder %s33, 0
      %p332 = por %p330, %p331
      %p333 = scmp.ne.s32.totalorder %s321, %s322
      %p334 = scmp.eq.s32.totalorder %s34, 1
      %p335 = por %p333, %p334
      %p337 = scmp.ne.s32.totalorder %s322, %s336
      %p338 = scmp.eq.s32.totalorder %s34, 0
      %p339 = por %p337, %p338
      %s341 = sadd.s32 %s340, 1
      %p344 = scmp.eq.s32.totalorder %s28, 1
      %p345 = scmp.ne.s32.totalorder %s340, %s342
      %p346 = scmp.eq.s32.totalorder %s28, 0
      %p347 = por %p345, %p346
      %p348 = scmp.ne.s32.totalorder %s340, %s342
      %p349 = scmp.eq.s32.totalorder %s33, 1
      %p350 = por %p348, %p349
      %p351 = scmp.ne.s32.totalorder %s342, %s343
      %p352 = scmp.eq.s32.totalorder %s33, 0
      %p353 = por %p351, %p352
      %p354 = scmp.ne.s32.totalorder %s342, %s343
      %p355 = scmp.eq.s32.totalorder %s34, 1
      %p356 = por %p354, %p355
      %p358 = scmp.ne.s32.totalorder %s343, %s357
      %p359 = scmp.eq.s32.totalorder %s34, 0
      %p360 = por %p358, %p359
      %s361 = ssub.s32 %s35, %s47
      %p362 = scmp.eq.s32.totalorder %s361, 0
      %s364 = sadd.s32 %s363, 1
      %s365 = scalar_select %p362, %s363, %s364
      %p368 = pneg %p362
      %p369 = scmp.eq.s32.totalorder %s28, 1
      %p370 = por %p368, %p369
      %p371 = scmp.ne.s32.totalorder %s363, %s366
      %p372 = scmp.eq.s32.totalorder %s28, 0
      %p373 = por %p371, %p372
      %p374 = scmp.ne.s32.totalorder %s363, %s366
      %p375 = scmp.eq.s32.totalorder %s33, 1
      %p376 = por %p374, %p375
      %p377 = scmp.ne.s32.totalorder %s366, %s367
      %p378 = scmp.eq.s32.totalorder %s33, 0
      %p379 = por %p377, %p378
      %p380 = scmp.ne.s32.totalorder %s366, %s367
      %p381 = scmp.eq.s32.totalorder %s34, 1
      %p382 = por %p380, %p381
      %p384 = scmp.ne.s32.totalorder %s367, %s383
      %p385 = scmp.eq.s32.totalorder %s34, 0
      %p386 = por %p384, %p385
      %p387 = scmp.le.s32.totalorder 1, %s28
      %p388 = scmp.lt.s32.totalorder %s28, 3
      %p389 = pnand %p387, %p388
      %p390 = pneg %p389
      // Predicated region
      $region9: #{tpu_custom_call.1} parent=5 // pred_check
        _
      $region10: #{tpu_custom_call.1} parent=5 // pred_check_branch
        %392 = sbr.rel (%p389) target = $region12
      $region11: #{tpu_custom_call.1} parent=5 // pred_region
        %s393 = ssub.s32 %s28, 1
        // Predicated region
        $region13: #{tpu_custom_call.1} parent=11 // pred_check
          %p394 = pneg %p66
        $region14: #{tpu_custom_call.1} parent=11 // pred_check_branch
          %396 = sbr.rel (%p394) target = $region16
        $region15: #{tpu_custom_call.1} parent=11 // pred_region
          %s397 = smul.u32 2, %s37
          %p398 = scmp.lt.s32.totalorder %s397, 1
          %s399 = scalar_select %p398, %s397, 1
          %s400 = smul.addr %s399, 4
          %s401 = scalar_lea.vmem %s0, %s400
          %s402 = smul.u32 2, %s37
        $region16: #{tpu_custom_call.1} parent=11 // pred_fallthru
          _
        // Predicated region
        $region17: #{tpu_custom_call.1} parent=11 // pred_check
          %p403 = pneg %p92
        $region18: #{tpu_custom_call.1} parent=11 // pred_check_branch
          %405 = sbr.rel (%p403) target = $region20
        $region19: #{tpu_custom_call.1} parent=11 // pred_region
          %s406 = smul.u32 2, %s37
          %p407 = scmp.lt.s32.totalorder %s406, 1
          %s408 = scalar_select %p407, %s406, 1
          %s409 = smul.addr %s408, 4
          %s410 = scalar_lea.vmem %s1, %s409
          %s411 = smul.u32 2, %s37
        $region20: #{tpu_custom_call.1} parent=11 // pred_fallthru
          _
        // Predicated region
        $region21: #{tpu_custom_call.1} parent=11 // pred_check
          %p412 = pneg %p113
        $region22: #{tpu_custom_call.1} parent=11 // pred_check_branch
          %414 = sbr.rel (%p412) target = $region24
        $region23: #{tpu_custom_call.1} parent=11 // pred_region
          %416 = vsyncadd [#allocation5], 0
          %s417 = sshll.u32 %s2, 4
          %s418 = int_to_ptr.hbm [resolvable:$true] %s417
          %s419 = sshll.u32 [#allocation4], 4
          %s420 = int_to_ptr.vmem [resolvable:$true] %s419
          %425 = dma.hbm_to_vmem [thread:$0]  %s418, 1024, %s420, [#allocation5], 64, 64, 4
        $region24: #{tpu_custom_call.1} parent=11 // pred_fallthru
          _
        // Predicated region
        $region25: #{tpu_custom_call.1} parent=11 // pred_check
          %p426 = pneg %p134
        $region26: #{tpu_custom_call.1} parent=11 // pred_check_branch
          %428 = sbr.rel (%p426) target = $region28
        $region27: #{tpu_custom_call.1} parent=11 // pred_region
          _
        $region28: #{tpu_custom_call.1} parent=11 // pred_fallthru
          _
        // Predicated region
        $region29: #{tpu_custom_call.1} parent=11 // pred_check
          %p429 = pneg %p155
        $region30: #{tpu_custom_call.1} parent=11 // pred_check_branch
          %431 = sbr.rel (%p429) target = $region32
        $region31: #{tpu_custom_call.1} parent=11 // pred_region
          _
        $region32: #{tpu_custom_call.1} parent=11 // pred_fallthru
          _
        // Predicated region
        $region33: #{tpu_custom_call.1} parent=11 // pred_check
          %p432 = pneg %p332
        $region34: #{tpu_custom_call.1} parent=11 // pred_check_branch
          %434 = sbr.rel (%p432) target = $region36
        $region35: #{tpu_custom_call.1} parent=11 // pred_region
          %436 = vsyncadd [#allocation14], 0
          %s437 = sshll.u32 %s11, 4
          %s438 = int_to_ptr.hbm [resolvable:$true] %s437
          %s439 = sshll.u32 [#allocation13], 4
          %s440 = int_to_ptr.vmem [resolvable:$true] %s439
          %445 = dma.hbm_to_vmem [thread:$0]  %s438, 1024, %s440, [#allocation14], 64, 64, 4
        $region36: #{tpu_custom_call.1} parent=11 // pred_fallthru
          _
        // Predicated region
        $region37: #{tpu_custom_call.1} parent=11 // pred_check
          %p446 = pneg %p353
        $region38: #{tpu_custom_call.1} parent=11 // pred_check_branch
          %448 = sbr.rel (%p446) target = $region40
        $region39: #{tpu_custom_call.1} parent=11 // pred_region
          _
        $region40: #{tpu_custom_call.1} parent=11 // pred_fallthru
          _
      $region12: #{tpu_custom_call.1} parent=5 // pred_fallthru
        _
      %p449 = scmp.lt.s32.totalorder %s28, 2
      // Predicated region
      $region41: #{tpu_custom_call.1} parent=5 // pred_check
        %p450 = pneg %p449
      $region42: #{tpu_custom_call.1} parent=5 // pred_check_branch
        %452 = sbr.rel (%p450) target = $region44
      $region43: #{tpu_custom_call.1} parent=5 // pred_region
        // Predicated region
        $region45: #{tpu_custom_call.1} parent=43 // pred_check
          %p453 = pneg %p175
        $region46: #{tpu_custom_call.1} parent=43 // pred_check_branch
          %455 = sbr.rel (%p453) target = $region48
        $region47: #{tpu_custom_call.1} parent=43 // pred_region
          %s456 = sand.u32 %s28, 1
          %s457 = scalar_lea.sflag [#allocation8], %s456
          %s458 = sand.u32 %s165, 1
          %s459 = smul.addr %s458, 192
          %s460 = scalar_lea.vmem [#allocation7], %s459
          %462 = vsyncadd %s457, 0
          %s463 = smul.addr %s36, 48
          %s464 = smul.addr %s463, 4
          %s465 = scalar_lea.hbm %s5, %s464
          %s466 = sshll.u32 %s465, 4
          %s467 = int_to_ptr.hbm [resolvable:$true] %s466
          %s468 = sshll.u32 %s460, 4
          %s469 = int_to_ptr.vmem [resolvable:$true] %s468
          %474 = dma.hbm_to_vmem [thread:$0]  %s467, 3072, %s469, %s457, 192, 192, 12
        $region48: #{tpu_custom_call.1} parent=43 // pred_fallthru
          _
        // Predicated region
        $region49: #{tpu_custom_call.1} parent=43 // pred_check
          %p475 = pneg %p201
        $region50: #{tpu_custom_call.1} parent=43 // pred_check_branch
          %477 = sbr.rel (%p475) target = $region52
        $region51: #{tpu_custom_call.1} parent=43 // pred_region
          %s478 = sand.u32 %s28, 1
          %s479 = scalar_lea.sflag [#allocation8], %s478
          %s480 = sand.u32 %s191, 1
          %s481 = smul.addr %s480, 64
          %s482 = scalar_lea.vmem [#allocation9], %s481
          %484 = vsyncadd %s479, 0
          %s485 = smul.addr %s36, 16
          %s486 = smul.addr %s485, 4
          %s487 = scalar_lea.hbm %s6, %s486
          %s488 = sshll.u32 %s487, 4
          %s489 = int_to_ptr.hbm [resolvable:$true] %s488
          %s490 = sshll.u32 %s482, 4
          %s491 = int_to_ptr.vmem [resolvable:$true] %s490
          %496 = dma.hbm_to_vmem [thread:$0]  %s489, 1024, %s491, %s479, 64, 64, 4
        $region52: #{tpu_custom_call.1} parent=43 // pred_fallthru
          _
        // Predicated region
        $region53: #{tpu_custom_call.1} parent=43 // pred_check
          %p497 = pneg %p227
        $region54: #{tpu_custom_call.1} parent=43 // pred_check_branch
          %499 = sbr.rel (%p497) target = $region56
        $region55: #{tpu_custom_call.1} parent=43 // pred_region
          %s500 = sand.u32 %s28, 1
          %s501 = scalar_lea.sflag [#allocation11], %s500
          %s502 = sand.u32 %s217, 1
          %s503 = smul.addr %s502, 64
          %s504 = scalar_lea.vmem [#allocation10], %s503
          %506 = vsyncadd %s501, 0
          %s507 = smul.addr %s36, 16
          %s508 = smul.addr %s507, 4
          %s509 = scalar_lea.hbm %s7, %s508
          %s510 = sshll.u32 %s509, 4
          %s511 = int_to_ptr.hbm [resolvable:$true] %s510
          %s512 = sshll.u32 %s504, 4
          %s513 = int_to_ptr.vmem [resolvable:$true] %s512
          %518 = dma.hbm_to_vmem [thread:$0]  %s511, 1024, %s513, %s501, 64, 64, 4
        $region56: #{tpu_custom_call.1} parent=43 // pred_fallthru
          _
        // Predicated region
        $region57: #{tpu_custom_call.1} parent=43 // pred_check
          %p519 = pneg %p253
        $region58: #{tpu_custom_call.1} parent=43 // pred_check_branch
          %521 = sbr.rel (%p519) target = $region60
        $region59: #{tpu_custom_call.1} parent=43 // pred_region
          %s522 = sand.u32 %s28, 1
          %s523 = scalar_lea.sflag [#allocation11], %s522
          %s524 = sand.u32 %s243, 1
          %s525 = smul.addr %s524, 64
          %s526 = scalar_lea.vmem [#allocation12], %s525
          %528 = vsyncadd %s523, 0
          %s529 = smul.addr %s36, 16
          %s530 = smul.addr %s529, 4
          %s531 = scalar_lea.hbm %s8, %s530
          %s532 = sshll.u32 %s531, 4
          %s533 = int_to_ptr.hbm [resolvable:$true] %s532
          %s534 = sshll.u32 %s526, 4
          %s535 = int_to_ptr.vmem [resolvable:$true] %s534
          %540 = dma.hbm_to_vmem [thread:$0]  %s533, 1024, %s535, %s523, 64, 64, 4
        $region60: #{tpu_custom_call.1} parent=43 // pred_fallthru
          _
        // Predicated region
        $region61: #{tpu_custom_call.1} parent=43 // pred_check
          %p541 = pneg %p279
        $region62: #{tpu_custom_call.1} parent=43 // pred_check_branch
          %543 = sbr.rel (%p541) target = $region64
        $region63: #{tpu_custom_call.1} parent=43 // pred_region
          %p544 = scmp.lt.s32.totalorder %s36, 1
          %s545 = scalar_select %p544, %s36, 1
          %s546 = smul.addr %s545, 2
          %s547 = smul.addr %s546, 8
          %s548 = scalar_lea.vmem %s9, %s547
        $region64: #{tpu_custom_call.1} parent=43 // pred_fallthru
          _
        // Predicated region
        $region65: #{tpu_custom_call.1} parent=43 // pred_check
          %p549 = pneg %p305
        $region66: #{tpu_custom_call.1} parent=43 // pred_check_branch
          %551 = sbr.rel (%p549) target = $region68
        $region67: #{tpu_custom_call.1} parent=43 // pred_region
          %p552 = scmp.lt.s32.totalorder %s36, 1
          %s553 = scalar_select %p552, %s36, 1
          %s554 = scalar_lea.vmem %s10, %s553
        $region68: #{tpu_custom_call.1} parent=43 // pred_fallthru
          _
      $region44: #{tpu_custom_call.1} parent=5 // pred_fallthru
        _
      %p555 = scmp.le.s32.totalorder 1, %s28
      %p556 = scmp.lt.s32.totalorder %s28, 3
      %p557 = pnand %p555, %p556
      %p558 = pneg %p557
      // Predicated region
      $region69: #{tpu_custom_call.1} parent=5 // pred_check
        _
      $region70: #{tpu_custom_call.1} parent=5 // pred_check_branch
        %560 = sbr.rel (%p557) target = $region72
      $region71: #{tpu_custom_call.1} parent=5 // pred_region
        %s561 = ssub.s32 %s28, 1
        // Predicated region
        $region73: #{tpu_custom_call.1} parent=71 // pred_check
          %p562 = pneg %p113
        $region74: #{tpu_custom_call.1} parent=71 // pred_check_branch
          %564 = sbr.rel (%p562) target = $region76
        $region75: #{tpu_custom_call.1} parent=71 // pred_region
          %566 = dma.done [#allocation5], 1024
        $region76: #{tpu_custom_call.1} parent=71 // pred_fallthru
          _
        %s567 = sand.u32 %s33, 1
        %s568 = scalar_lea.sflag [#allocation8], %s567
        %s569 = sand.u32 %s168, 1
        %s570 = smul.addr %s569, 192
        %s571 = scalar_lea.vmem [#allocation7], %s570
        // Predicated region
        $region77: #{tpu_custom_call.1} parent=71 // pred_check
          %p572 = pneg %p181
        $region78: #{tpu_custom_call.1} parent=71 // pred_check_branch
          %574 = sbr.rel (%p572) target = $region80
        $region79: #{tpu_custom_call.1} parent=71 // pred_region
          %576 = dma.done %s568, 3072
        $region80: #{tpu_custom_call.1} parent=71 // pred_fallthru
          _
        %s577 = sand.u32 %s33, 1
        %s578 = scalar_lea.sflag [#allocation8], %s577
        %s579 = sand.u32 %s194, 1
        %s580 = smul.addr %s579, 64
        %s581 = scalar_lea.vmem [#allocation9], %s580
        // Predicated region
        $region81: #{tpu_custom_call.1} parent=71 // pred_check
          %p582 = pneg %p207
        $region82: #{tpu_custom_call.1} parent=71 // pred_check_branch
          %584 = sbr.rel (%p582) target = $region84
        $region83: #{tpu_custom_call.1} parent=71 // pred_region
          %586 = dma.done %s578, 1024
        $region84: #{tpu_custom_call.1} parent=71 // pred_fallthru
          _
        %s587 = sand.u32 %s33, 1
        %s588 = scalar_lea.sflag [#allocation11], %s587
        %s589 = sand.u32 %s220, 1
        %s590 = smul.addr %s589, 64
        %s591 = scalar_lea.vmem [#allocation10], %s590
        // Predicated region
        $region85: #{tpu_custom_call.1} parent=71 // pred_check
          %p592 = pneg %p233
        $region86: #{tpu_custom_call.1} parent=71 // pred_check_branch
          %594 = sbr.rel (%p592) target = $region88
        $region87: #{tpu_custom_call.1} parent=71 // pred_region
          %596 = dma.done %s588, 1024
        $region88: #{tpu_custom_call.1} parent=71 // pred_fallthru
          _
        %s597 = sand.u32 %s33, 1
        %s598 = scalar_lea.sflag [#allocation11], %s597
        %s599 = sand.u32 %s246, 1
        %s600 = smul.addr %s599, 64
        %s601 = scalar_lea.vmem [#allocation12], %s600
        // Predicated region
        $region89: #{tpu_custom_call.1} parent=71 // pred_check
          %p602 = pneg %p259
        $region90: #{tpu_custom_call.1} parent=71 // pred_check_branch
          %604 = sbr.rel (%p602) target = $region92
        $region91: #{tpu_custom_call.1} parent=71 // pred_region
          %606 = dma.done %s598, 1024
        $region92: #{tpu_custom_call.1} parent=71 // pred_fallthru
          _
        // Predicated region
        $region93: #{tpu_custom_call.1} parent=71 // pred_check
          %p607 = pneg %p332
        $region94: #{tpu_custom_call.1} parent=71 // pred_check_branch
          %609 = sbr.rel (%p607) target = $region96
        $region95: #{tpu_custom_call.1} parent=71 // pred_region
          %611 = dma.done [#allocation14], 1024
        $region96: #{tpu_custom_call.1} parent=71 // pred_fallthru
          _
        %s612 = smul.u32 2, %s37
        %p613 = scmp.lt.s32.totalorder %s612, 1
        %s614 = scalar_select %p613, %s612, 1
        %s615 = smul.addr %s614, 4
        %s616 = scalar_lea.vmem %s0, %s615
        %p617 = pneg %p66
        %p618 = pneg %p63
        %s619 = smul.u32 2, %s37
        %p620 = scmp.lt.s32.totalorder %s619, 1
        %s621 = scalar_select %p620, %s619, 1
        %s622 = smul.addr %s621, 4
        %s623 = scalar_lea.vmem %s1, %s622
        %p624 = pneg %p92
        %p625 = pneg %p89
        %p626 = pneg %p113
        %p627 = pneg %p110
        %p628 = pneg %p134
        %p629 = pneg %p131
        %p630 = pneg %p155
        %p631 = pneg %p152
        %s632 = sand.u32 %s33, 1
        %s633 = scalar_lea.sflag [#allocation8], %s632
        %s634 = sand.u32 %s168, 1
        %s635 = smul.addr %s634, 192
        %s636 = scalar_lea.vmem [#allocation7], %s635
        %p637 = pneg %p181
        %p638 = pneg %p178
        %s639 = sand.u32 %s33, 1
        %s640 = scalar_lea.sflag [#allocation8], %s639
        %s641 = sand.u32 %s194, 1
        %s642 = smul.addr %s641, 64
        %s643 = scalar_lea.vmem [#allocation9], %s642
        %p644 = pneg %p207
        %p645 = pneg %p204
        %s646 = sand.u32 %s33, 1
        %s647 = scalar_lea.sflag [#allocation11], %s646
        %s648 = sand.u32 %s220, 1
        %s649 = smul.addr %s648, 64
        %s650 = scalar_lea.vmem [#allocation10], %s649
        %p651 = pneg %p233
        %p652 = pneg %p230
        %s653 = sand.u32 %s33, 1
        %s654 = scalar_lea.sflag [#allocation11], %s653
        %s655 = sand.u32 %s246, 1
        %s656 = smul.addr %s655, 64
        %s657 = scalar_lea.vmem [#allocation12], %s656
        %p658 = pneg %p259
        %p659 = pneg %p256
        %p660 = scmp.lt.s32.totalorder %s38, 1
        %s661 = scalar_select %p660, %s38, 1
        %s662 = smul.addr %s661, 2
        %s663 = smul.addr %s662, 8
        %s664 = scalar_lea.vmem %s9, %s663
        %p665 = pneg %p285
        %p666 = pneg %p282
        %p667 = scmp.lt.s32.totalorder %s38, 1
        %s668 = scalar_select %p667, %s38, 1
        %s669 = scalar_lea.vmem %s10, %s668
        %p670 = pneg %p311
        %p671 = pneg %p308
        %p672 = pneg %p332
        %p673 = pneg %p329
        %p674 = pneg %p353
        %p675 = pneg %p350
        %p676 = pneg %p379
        %p677 = pneg %p376
        %s678 = smul.u32 2, %s37
        %p679 = scmp.lt.s32.totalorder %s678, 1
        %s680 = scalar_select %p679, %s678, 1
        %s681 = smul.addr %s680, 4
        %s682 = scalar_lea.vmem %s0, %s681
        %s683 = smul.u32 2, %s37
        %s684 = smul.u32 2, %s37
        %p685 = scmp.lt.s32.totalorder %s684, 1
        %s686 = scalar_select %p685, %s684, 1
        %s687 = smul.addr %s686, 4
        %s688 = scalar_lea.vmem %s1, %s687
        %s689 = smul.u32 2, %s37
        %p690 = scmp.lt.s32.totalorder %s38, 1
        %s691 = scalar_select %p690, %s38, 1
        %s692 = smul.addr %s691, 2
        %s693 = smul.addr %s692, 8
        %s694 = scalar_lea.vmem %s9, %s693
        %p695 = scmp.lt.s32.totalorder %s38, 1
        %s696 = scalar_select %p695, %s38, 1
        %s697 = scalar_lea.vmem %s10, %s696
        %s698 = smul.u32 2, %s37
        %v700 = vlaneseq
        %v701 = vand.u32 %v700, 127
        %vm702 = vcmp.lt.s32.totalorder %v701, 32
        %v703 = vsel %vm702, 1, 0
        %v704 = vcvt.s32.f32 %v703
        %v705 = vld [vmem:[%s694] sm:$0xff]
        %v706 = vld [vmem:[%s694 + $0x8] sm:$0x1]
        %v707 = vld [vmem:[%s697] sm:$0x1]
        %p708 = scmp.eq.s32.totalorder %s38, 0
        // Predicated region
        $region97: #{tpu_custom_call.1} parent=71 // pred_check
          %p709 = pneg %p708
        $region98: #{tpu_custom_call.1} parent=71 // pred_check_branch
          %711 = sbr.rel (%p709) target = $region100
        $region99: #{tpu_custom_call.1} parent=71 // pred_region
          %v712 = vld [vmem:[%s688] sm:$0xf]
          %v713 = vld [vmem:[%s688 + $0x4] sm:$0xf]
          %v714 = vld [vmem:[#allocation4] sm:$0xf]
          %v715 = vld [vmem:[#allocation4 + $0x4] sm:$0xf]
          %v716 = vld [vmem:[#allocation4 + $0x8] sm:$0xf]
          %v717 = vld [vmem:[#allocation4 + $0xc] sm:$0xf]
          %v718 = vld [vmem:[#allocation4 + $0x10] sm:$0xf]
          %v719 = vld [vmem:[#allocation4 + $0x14] sm:$0xf]
          %v720 = vld [vmem:[#allocation4 + $0x18] sm:$0xf]
          %v721 = vld [vmem:[#allocation4 + $0x1c] sm:$0xf]
          %v722 = vld [vmem:[#allocation4 + $0x20] sm:$0xf]
          %v723 = vld [vmem:[#allocation4 + $0x24] sm:$0xf]
          %v724 = vld [vmem:[#allocation4 + $0x28] sm:$0xf]
          %v725 = vld [vmem:[#allocation4 + $0x2c] sm:$0xf]
          %v726 = vld [vmem:[#allocation4 + $0x30] sm:$0xf]
          %v727 = vld [vmem:[#allocation4 + $0x34] sm:$0xf]
          %v728 = vld [vmem:[#allocation4 + $0x38] sm:$0xf]
          %v729 = vld [vmem:[#allocation4 + $0x3c] sm:$0xf]
          %v730 = vld [vmem:[%s3] sm:$0x1]
          %v732 = vperm.slane %v730, 0
          %v736 = vunpack.c.l.b16 %v712
          %v737 = vunpack.c.l.b16 %v713
          %v738 = vpack.c.b16 %v737, %v736
          %v756 = vunpack.c.l.b16 %v714
          %v757 = vunpack.c.l.b16 %v715
          %v758 = vunpack.c.l.b16 %v716
          %v759 = vunpack.c.l.b16 %v717
          %v760 = vunpack.c.l.b16 %v718
          %v761 = vunpack.c.l.b16 %v719
          %v762 = vunpack.c.l.b16 %v720
          %v763 = vunpack.c.l.b16 %v721
          %v764 = vunpack.c.l.b16 %v722
          %v765 = vunpack.c.l.b16 %v723
          %v766 = vunpack.c.l.b16 %v724
          %v767 = vunpack.c.l.b16 %v725
          %v768 = vunpack.c.l.b16 %v726
          %v769 = vunpack.c.l.b16 %v727
          %v770 = vunpack.c.l.b16 %v728
          %v771 = vunpack.c.l.b16 %v729
          %v772 = vpack.c.b16 %v757, %v756
          %v773 = vpack.c.b16 %v759, %v758
          %v774 = vpack.c.b16 %v761, %v760
          %v775 = vpack.c.b16 %v763, %v762
          %v776 = vpack.c.b16 %v765, %v764
          %v777 = vpack.c.b16 %v767, %v766
          %v778 = vpack.c.b16 %v769, %v768
          %v779 = vpack.c.b16 %v771, %v770
          %788 = vmatpush.bf16.msra.mxu0 %v779
          %789 = vmatpush.bf16.msra.mxu0 %v778
          %790 = vmatpush.bf16.msra.mxu0 %v777
          %791 = vmatpush.bf16.msra.mxu0 %v776
          %792 = vmatpush.bf16.msra.mxu0 %v775
          %793 = vmatpush.bf16.msra.mxu0 %v774
          %794 = vmatpush.bf16.msra.mxu0 %v773
          %795 = vmatpush.bf16.msra.mxu0 %v772
          %796 = vmatmul.bf16.gmra.mxu0 %v738
          %v797 = vpop.f32.mrf.mxu0
          %v798 = vadd.f32 %v732, %v797
          %v799 = vpop.f32.mrf.mxu0
          %v800 = vadd.f32 %v732, %v799
          %801 = vdwg.mxu0
          %v802 = vld [vmem:[%s682] sm:$0xf]
          %v803 = vld [vmem:[%s682 + $0x4] sm:$0xf]
          %v804 = vunpack.c.l.bf16 %v802
          %v805 = vunpack.c.l.bf16 %v803
          %v806 = vadd.f32 %v804, %v798
          %v807 = vadd.f32 %v805, %v800
          %808 = vst [vmem:[#allocation2] sm:$0xff] %v806
          %809 = vst [vmem:[#allocation2 + $0x8] sm:$0xff] %v807
        $region100: #{tpu_custom_call.1} parent=71 // pred_fallthru
          _
        %v810 = vld [vmem:[#allocation2] sm:$0xff]
        %v811 = vld [vmem:[#allocation2 + $0x8] sm:$0xff]
        %v812 = vpack.c.bf16 %v811, %v810
        %v813 = vld [vmem:[%s571] sm:$0xff]
        %v814 = vld [vmem:[%s571 + $0x8] sm:$0xf]
        %v815 = vld [vmem:[%s571 + $0xc] sm:$0xff]
        %v816 = vld [vmem:[%s571 + $0x14] sm:$0xf]
        %v817 = vld [vmem:[%s571 + $0x18] sm:$0xff]
        %v818 = vld [vmem:[%s571 + $0x20] sm:$0xf]
        %v819 = vld [vmem:[%s571 + $0x24] sm:$0xff]
        %v820 = vld [vmem:[%s571 + $0x2c] sm:$0xf]
        %v821 = vld [vmem:[%s571 + $0x30] sm:$0xff]
        %v822 = vld [vmem:[%s571 + $0x38] sm:$0xf]
        %v823 = vld [vmem:[%s571 + $0x3c] sm:$0xff]
        %v824 = vld [vmem:[%s571 + $0x44] sm:$0xf]
        %v825 = vld [vmem:[%s571 + $0x48] sm:$0xff]
        %v826 = vld [vmem:[%s571 + $0x50] sm:$0xf]
        %v827 = vld [vmem:[%s571 + $0x54] sm:$0xff]
        %v828 = vld [vmem:[%s571 + $0x5c] sm:$0xf]
        %v829 = vld [vmem:[%s571 + $0x60] sm:$0xff]
        %v830 = vld [vmem:[%s571 + $0x68] sm:$0xf]
        %v831 = vld [vmem:[%s571 + $0x6c] sm:$0xff]
        %v832 = vld [vmem:[%s571 + $0x74] sm:$0xf]
        %v833 = vld [vmem:[%s571 + $0x78] sm:$0xff]
        %v834 = vld [vmem:[%s571 + $0x80] sm:$0xf]
        %v835 = vld [vmem:[%s571 + $0x84] sm:$0xff]
        %v836 = vld [vmem:[%s571 + $0x8c] sm:$0xf]
        %v837 = vld [vmem:[%s571 + $0x90] sm:$0xff]
        %v838 = vld [vmem:[%s571 + $0x98] sm:$0xf]
        %v839 = vld [vmem:[%s571 + $0x9c] sm:$0xff]
        %v840 = vld [vmem:[%s571 + $0xa4] sm:$0xf]
        %v841 = vld [vmem:[%s571 + $0xa8] sm:$0xff]
        %v842 = vld [vmem:[%s571 + $0xb0] sm:$0xf]
        %v843 = vld [vmem:[%s571 + $0xb4] sm:$0xff]
        %v844 = vld [vmem:[%s571 + $0xbc] sm:$0xf]
        %v877 = vunpack.c.l.b16 %v813
        %v878 = vunpack.c.h.b16 %v813
        %v879 = vunpack.c.l.b16 %v814
        %v880 = vunpack.c.l.b16 %v815
        %v881 = vunpack.c.h.b16 %v815
        %v882 = vunpack.c.l.b16 %v816
        %v883 = vunpack.c.l.b16 %v817
        %v884 = vunpack.c.h.b16 %v817
        %v885 = vunpack.c.l.b16 %v818
        %v886 = vunpack.c.l.b16 %v819
        %v887 = vunpack.c.h.b16 %v819
        %v888 = vunpack.c.l.b16 %v820
        %v889 = vunpack.c.l.b16 %v821
        %v890 = vunpack.c.h.b16 %v821
        %v891 = vunpack.c.l.b16 %v822
        %v892 = vunpack.c.l.b16 %v823
        %v893 = vunpack.c.h.b16 %v823
        %v894 = vunpack.c.l.b16 %v824
        %v895 = vunpack.c.l.b16 %v825
        %v896 = vunpack.c.h.b16 %v825
        %v897 = vunpack.c.l.b16 %v826
        %v898 = vunpack.c.l.b16 %v827
        %v899 = vunpack.c.h.b16 %v827
        %v900 = vunpack.c.l.b16 %v828
        %v901 = vunpack.c.l.b16 %v829
        %v902 = vunpack.c.h.b16 %v829
        %v903 = vunpack.c.l.b16 %v830
        %v904 = vunpack.c.l.b16 %v831
        %v905 = vunpack.c.h.b16 %v831
        %v906 = vunpack.c.l.b16 %v832
        %v907 = vunpack.c.l.b16 %v833
        %v908 = vunpack.c.h.b16 %v833
        %v909 = vunpack.c.l.b16 %v834
        %v910 = vunpack.c.l.b16 %v835
        %v911 = vunpack.c.h.b16 %v835
        %v912 = vunpack.c.l.b16 %v836
        %v913 = vunpack.c.l.b16 %v837
        %v914 = vunpack.c.h.b16 %v837
        %v915 = vunpack.c.l.b16 %v838
        %v916 = vunpack.c.l.b16 %v839
        %v917 = vunpack.c.h.b16 %v839
        %v918 = vunpack.c.l.b16 %v840
        %v919 = vunpack.c.l.b16 %v841
        %v920 = vunpack.c.h.b16 %v841
        %v921 = vunpack.c.l.b16 %v842
        %v922 = vunpack.c.l.b16 %v843
        %v923 = vunpack.c.h.b16 %v843
        %v924 = vunpack.c.l.b16 %v844
        %v925 = vpack.c.b16 %v880, %v877
        %v926 = vpack.c.b16 %v881, %v878
        %v927 = vpack.c.b16 %v882, %v879
        %v928 = vpack.c.b16 %v886, %v883
        %v929 = vpack.c.b16 %v887, %v884
        %v930 = vpack.c.b16 %v888, %v885
        %v931 = vpack.c.b16 %v892, %v889
        %v932 = vpack.c.b16 %v893, %v890
        %v933 = vpack.c.b16 %v894, %v891
        %v934 = vpack.c.b16 %v898, %v895
        %v935 = vpack.c.b16 %v899, %v896
        %v936 = vpack.c.b16 %v900, %v897
        %v937 = vpack.c.b16 %v904, %v901
        %v938 = vpack.c.b16 %v905, %v902
        %v939 = vpack.c.b16 %v906, %v903
        %v940 = vpack.c.b16 %v910, %v907
        %v941 = vpack.c.b16 %v911, %v908
        %v942 = vpack.c.b16 %v912, %v909
        %v943 = vpack.c.b16 %v916, %v913
        %v944 = vpack.c.b16 %v917, %v914
        %v945 = vpack.c.b16 %v918, %v915
        %v946 = vpack.c.b16 %v922, %v919
        %v947 = vpack.c.b16 %v923, %v920
        %v948 = vpack.c.b16 %v924, %v921
        %973 = vmatpush.bf16.msra.mxu0 %v946
        %974 = vmatpush.bf16.msra.mxu0 %v943
        %975 = vmatpush.bf16.msra.mxu0 %v940
        %976 = vmatpush.bf16.msra.mxu0 %v937
        %977 = vmatpush.bf16.msra.mxu0 %v934
        %978 = vmatpush.bf16.msra.mxu0 %v931
        %979 = vmatpush.bf16.msra.mxu0 %v928
        %980 = vmatpush.bf16.msra.mxu0 %v925
        %981 = vmatmul.bf16.gmra.mxu0 %v812
        %v982 = vpop.f32.mrf.mxu0
        %v983 = vadd.f32 0.0, %v982
        %v984 = vpop.f32.mrf.mxu0
        %v985 = vadd.f32 0.0, %v984
        %986 = vdwg.mxu0
        %987 = vmatpush.bf16.msra.mxu0 %v947
        %988 = vmatpush.bf16.msra.mxu0 %v944
        %989 = vmatpush.bf16.msra.mxu0 %v941
        %990 = vmatpush.bf16.msra.mxu0 %v938
        %991 = vmatpush.bf16.msra.mxu0 %v935
        %992 = vmatpush.bf16.msra.mxu0 %v932
        %993 = vmatpush.bf16.msra.mxu0 %v929
        %994 = vmatpush.bf16.msra.mxu0 %v926
        %995 = vmatmul.bf16.gmra.mxu0 %v812
        %v996 = vpop.f32.mrf.mxu0
        %v997 = vadd.f32 0.0, %v996
        %v998 = vpop.f32.mrf.mxu0
        %v999 = vadd.f32 0.0, %v998
        %1000 = vdwg.mxu0
        %1001 = vmatpush.bf16.msra.mxu0 %v948
        %1002 = vmatpush.bf16.msra.mxu0 %v945
        %1003 = vmatpush.bf16.msra.mxu0 %v942
        %1004 = vmatpush.bf16.msra.mxu0 %v939
        %1005 = vmatpush.bf16.msra.mxu0 %v936
        %1006 = vmatpush.bf16.msra.mxu0 %v933
        %1007 = vmatpush.bf16.msra.mxu0 %v930
        %1008 = vmatpush.bf16.msra.mxu0 %v927
        %1009 = vmatmul.bf16.gmra.mxu0 %v812
        %v1010 = vpop.f32.mrf.mxu0
        %v1011 = vadd.f32 0.0, %v1010
        %v1012 = vpop.f32.mrf.mxu0
        %v1013 = vadd.f32 0.0, %v1012
        %1014 = vdwg.mxu0
        %v1015 = vld [vmem:[%s4] sm:$0xf]
        %1016 = vmatpush.bf16.msra.mxu0 %v946
        %1017 = vmatpush.bf16.msra.mxu0 %v943
        %1018 = vmatpush.bf16.msra.mxu0 %v940
        %1019 = vmatpush.bf16.msra.mxu0 %v937
        %1020 = vmatpush.bf16.msra.mxu0 %v934
        %1021 = vmatpush.bf16.msra.mxu0 %v931
        %1022 = vmatpush.bf16.msra.mxu0 %v928
        %1023 = vmatpush.bf16.msra.mxu0 %v925
        %1024 = vmatmul.bf16.gmra.mxu0 %v1015
        %v1025 = vpop.f32.mrf.mxu0
        %v1026 = vadd.f32 0.0, %v1025
        %v1027 = vpop.f32.mrf.mxu0
        %1028 = vdwg.mxu0
        %1029 = vmatpush.bf16.msra.mxu0 %v947
        %1030 = vmatpush.bf16.msra.mxu0 %v944
        %1031 = vmatpush.bf16.msra.mxu0 %v941
        %1032 = vmatpush.bf16.msra.mxu0 %v938
        %1033 = vmatpush.bf16.msra.mxu0 %v935
        %1034 = vmatpush.bf16.msra.mxu0 %v932
        %1035 = vmatpush.bf16.msra.mxu0 %v929
        %1036 = vmatpush.bf16.msra.mxu0 %v926
        %1037 = vmatmul.bf16.gmra.mxu0 %v1015
        %v1038 = vpop.f32.mrf.mxu0
        %v1039 = vadd.f32 0.0, %v1038
        %v1040 = vpop.f32.mrf.mxu0
        %1041 = vdwg.mxu0
        %v1042 = vadd.f32 %v983, %v1026
        %v1043 = vadd.f32 %v985, %v1026
        %v1044 = vperm.slane %v705, 0
        %v1045 = vadd.f32 %v1042, %v1044
        %v1046 = vadd.f32 %v1043, %v1044
        %v1047 = vmul.f32 %v1045, 0.35355338
        %v1048 = vmul.f32 %v1046, 0.35355338
        %v1049 = vpack.c.bf16 %v1047, %v1047
        %v1050 = vpack.c.bf16 %v1048, %v1048
        %v1051 = vadd.f32 %v997, %v1039
        %v1052 = vadd.f32 %v999, %v1039
        %v1053 = vperm.slane %v705, 1
        %v1054 = vadd.f32 %v1051, %v1053
        %v1055 = vadd.f32 %v1052, %v1053
        %v1056 = vpack.c.bf16 %v1054, %v1054
        %v1057 = vpack.c.bf16 %v1055, %v1055
        %v1058 = vperm.slane %v705, 2
        %v1059 = vadd.f32 %v1011, %v1058
        %v1060 = vadd.f32 %v1013, %v1058
        %v1061 = vpack.c.bf16 %v1059, %v1059
        %v1062 = vpack.c.bf16 %v1060, %v1060
        %vm1063 = vcmask 261120
        %v1065 = vsel %vm1063, %v1049, 0
        %v1068 = vsel %vm1063, %v1056, 0
        %1070 = vmatpush.bf16.xpose.msra.mxu0 0
        %1071 = vmatpush.bf16.xpose.msra.mxu0 0
        %1072 = vmatpush.bf16.xpose.msra.mxu0 0
        %1073 = vmatpush.bf16.xpose.msra.mxu0 0
        %1074 = vmatpush.bf16.xpose.msra.mxu0 0
        %1075 = vmatpush.bf16.xpose.msra.mxu0 0
        %1076 = vmatpush.bf16.xpose.msra.mxu0 0
        %1077 = vmatpush.bf16.xpose.msra.mxu0 %v1068
        %1078 = vmatmul.bf16.gmra.mxu0 %v1065
        %v1079 = vpop.f32.mrf.mxu0
        %v1080 = vadd.f32 0.0, %v1079
        %v1081 = vpop.f32.mrf.mxu0
        %1082 = vdwg.mxu0
        %v1084 = vsel %vm1063, %v1050, 0
        %v1087 = vsel %vm1063, %v1057, 0
        %1089 = vmatpush.bf16.xpose.msra.mxu0 0
        %1090 = vmatpush.bf16.xpose.msra.mxu0 0
        %1091 = vmatpush.bf16.xpose.msra.mxu0 0
        %1092 = vmatpush.bf16.xpose.msra.mxu0 0
        %1093 = vmatpush.bf16.xpose.msra.mxu0 0
        %1094 = vmatpush.bf16.xpose.msra.mxu0 0
        %1095 = vmatpush.bf16.xpose.msra.mxu0 0
        %1096 = vmatpush.bf16.xpose.msra.mxu0 %v1087
        %1097 = vmatmul.bf16.gmra.mxu0 %v1084
        %v1098 = vpop.f32.mrf.mxu0
        %v1099 = vadd.f32 0.0, %v1098
        %v1100 = vpop.f32.mrf.mxu0
        %1101 = vdwg.mxu0
        %vm1102 = vcmask 64512
        %v1103 = vsel %vm1102, %v1080, -inf
        %1104 = vmax.xlane.f32.xlu0 %v1103
        %v1105 = vpop.xlane.xlu0 %1104
        %v1106 = vsel %vm1102, %v1099, -inf
        %1107 = vmax.xlane.f32.xlu0 %v1106
        %v1108 = vpop.xlane.xlu0 %1107
        %v1109 = vsub.f32 %v1080, %v1105
        %v1110 = vsub.f32 %v1099, %v1108
        %v1111 = vmul.f32 %v1109, 1.442695
        %v1112 = vpow.pop %v1111
        %v1113 = vmul.f32 %v1110, 1.442695
        %v1114 = vpow.pop %v1113
        %v1115 = vsel %vm1102, %v1112, 0.0
        %1116 = vadd.xlane.f32.xlu0 %v1115
        %v1117 = vpop.xlane.xlu0 %1116
        %v1118 = vsel %vm1102, %v1114, 0.0
        %1119 = vadd.xlane.f32.xlu0 %v1118
        %v1120 = vpop.xlane.xlu0 %1119
        %v1121 = vrcp.pop %v1117
        %v1122 = vrcp.pop %v1120
        %v1123 = vpack.c.bf16 %v1112, %v1112
        %v1124 = vpack.c.bf16 %v1114, %v1114
        %v1126 = vsel %vm1102, %v1123, 0
        %vm1128 = vcmask 1043456
        %v1130 = vsel %vm1128, %v1061, 0
        %1132 = vmatpush.bf16.msra.mxu0 0
        %1133 = vmatpush.bf16.msra.mxu0 0
        %1134 = vmatpush.bf16.msra.mxu0 0
        %1135 = vmatpush.bf16.msra.mxu0 0
        %1136 = vmatpush.bf16.msra.mxu0 0
        %1137 = vmatpush.bf16.msra.mxu0 0
        %1138 = vmatpush.bf16.msra.mxu0 0
        %1139 = vmatpush.bf16.msra.mxu0 %v1130
        %1140 = vmatmul.bf16.gmra.mxu0 %v1126
        %v1141 = vpop.f32.mrf.mxu0
        %v1142 = vadd.f32 0.0, %v1141
        %v1143 = vpop.f32.mrf.mxu0
        %1144 = vdwg.mxu0
        %v1146 = vsel %vm1102, %v1124, 0
        %v1149 = vsel %vm1128, %v1062, 0
        %1151 = vmatpush.bf16.msra.mxu0 0
        %1152 = vmatpush.bf16.msra.mxu0 0
        %1153 = vmatpush.bf16.msra.mxu0 0
        %1154 = vmatpush.bf16.msra.mxu0 0
        %1155 = vmatpush.bf16.msra.mxu0 0
        %1156 = vmatpush.bf16.msra.mxu0 0
        %1157 = vmatpush.bf16.msra.mxu0 0
        %1158 = vmatpush.bf16.msra.mxu0 %v1149
        %1159 = vmatmul.bf16.gmra.mxu0 %v1146
        %v1160 = vpop.f32.mrf.mxu0
        %v1161 = vadd.f32 0.0, %v1160
        %v1162 = vpop.f32.mrf.mxu0
        %1163 = vdwg.mxu0
        %v1164 = vmul.f32 %v1142, %v1121
        %v1165 = vmul.f32 %v1161, %v1122
        %1166 = vst.msk [vmem:[#allocation3] sm:$0xff] %vm1063, %v1164
        %1167 = vst.msk [vmem:[#allocation3 + $0x8] sm:$0xff] %vm1063, %v1165
        %v1169 = vunpack.c.l.b16 %v1049
        %v1170 = vpack.c.b16 %v1169, %v1169
        %1171 = vrot.lane.b32.xlu0 %v1170, 96
        %v1172 = vpop.permute.xlu0 %1171
        %v1174 = vunpack.c.l.b16 %v1056
        %v1175 = vpack.c.b16 %v1174, %v1174
        %1176 = vrot.lane.b32.xlu0 %v1175, 96
        %v1177 = vpop.permute.xlu0 %1176
        %v1179 = vsel %vm1063, %v1172, 0
        %v1182 = vsel %vm1063, %v1177, 0
        %1184 = vmatpush.bf16.xpose.msra.mxu0 0
        %1185 = vmatpush.bf16.xpose.msra.mxu0 0
        %1186 = vmatpush.bf16.xpose.msra.mxu0 0
        %1187 = vmatpush.bf16.xpose.msra.mxu0 0
        %1188 = vmatpush.bf16.xpose.msra.mxu0 0
        %1189 = vmatpush.bf16.xpose.msra.mxu0 0
        %1190 = vmatpush.bf16.xpose.msra.mxu0 0
        %1191 = vmatpush.bf16.xpose.msra.mxu0 %v1182
        %1192 = vmatmul.bf16.gmra.mxu0 %v1179
        %v1193 = vpop.f32.mrf.mxu0
        %v1194 = vadd.f32 0.0, %v1193
        %v1195 = vpop.f32.mrf.mxu0
        %1196 = vdwg.mxu0
        %v1198 = vunpack.c.l.b16 %v1050
        %v1199 = vpack.c.b16 %v1198, %v1198
        %1200 = vrot.lane.b32.xlu0 %v1199, 96
        %v1201 = vpop.permute.xlu0 %1200
        %v1203 = vunpack.c.l.b16 %v1057
        %v1204 = vpack.c.b16 %v1203, %v1203
        %1205 = vrot.lane.b32.xlu0 %v1204, 96
        %v1206 = vpop.permute.xlu0 %1205
        %v1208 = vsel %vm1063, %v1201, 0
        %v1211 = vsel %vm1063, %v1206, 0
        %1213 = vmatpush.bf16.xpose.msra.mxu0 0
        %1214 = vmatpush.bf16.xpose.msra.mxu0 0
        %1215 = vmatpush.bf16.xpose.msra.mxu0 0
        %1216 = vmatpush.bf16.xpose.msra.mxu0 0
        %1217 = vmatpush.bf16.xpose.msra.mxu0 0
        %1218 = vmatpush.bf16.xpose.msra.mxu0 0
        %1219 = vmatpush.bf16.xpose.msra.mxu0 0
        %1220 = vmatpush.bf16.xpose.msra.mxu0 %v1211
        %1221 = vmatmul.bf16.gmra.mxu0 %v1208
        %v1222 = vpop.f32.mrf.mxu0
        %v1223 = vadd.f32 0.0, %v1222
        %v1224 = vpop.f32.mrf.mxu0
        %1225 = vdwg.mxu0
        %v1226 = vsel %vm1102, %v1194, -inf
        %1227 = vmax.xlane.f32.xlu0 %v1226
        %v1228 = vpop.xlane.xlu0 %1227
        %v1229 = vsel %vm1102, %v1223, -inf
        %1230 = vmax.xlane.f32.xlu0 %v1229
        %v1231 = vpop.xlane.xlu0 %1230
        %v1232 = vsub.f32 %v1194, %v1228
        %v1233 = vsub.f32 %v1223, %v1231
        %v1234 = vmul.f32 %v1232, 1.442695
        %v1235 = vpow.pop %v1234
        %v1236 = vmul.f32 %v1233, 1.442695
        %v1237 = vpow.pop %v1236
        %v1238 = vsel %vm1102, %v1235, 0.0
        %1239 = vadd.xlane.f32.xlu0 %v1238
        %v1240 = vpop.xlane.xlu0 %1239
        %v1241 = vsel %vm1102, %v1237, 0.0
        %1242 = vadd.xlane.f32.xlu0 %v1241
        %v1243 = vpop.xlane.xlu0 %1242
        %v1244 = vrcp.pop %v1240
        %v1245 = vrcp.pop %v1243
        %v1246 = vpack.c.bf16 %v1235, %v1235
        %v1247 = vpack.c.bf16 %v1237, %v1237
        %v1249 = vunpack.c.l.b16 %v1061
        %v1250 = vpack.c.b16 %v1249, %v1249
        %1251 = vrot.lane.b32.xlu0 %v1250, 96
        %v1252 = vpop.permute.xlu0 %1251
        %v1254 = vsel %vm1102, %v1246, 0
        %v1257 = vsel %vm1128, %v1252, 0
        %1259 = vmatpush.bf16.msra.mxu0 0
        %1260 = vmatpush.bf16.msra.mxu0 0
        %1261 = vmatpush.bf16.msra.mxu0 0
        %1262 = vmatpush.bf16.msra.mxu0 0
        %1263 = vmatpush.bf16.msra.mxu0 0
        %1264 = vmatpush.bf16.msra.mxu0 0
        %1265 = vmatpush.bf16.msra.mxu0 0
        %1266 = vmatpush.bf16.msra.mxu0 %v1257
        %1267 = vmatmul.bf16.gmra.mxu0 %v1254
        %v1268 = vpop.f32.mrf.mxu0
        %v1269 = vadd.f32 0.0, %v1268
        %v1270 = vpop.f32.mrf.mxu0
        %1271 = vdwg.mxu0
        %v1273 = vunpack.c.l.b16 %v1062
        %v1274 = vpack.c.b16 %v1273, %v1273
        %1275 = vrot.lane.b32.xlu0 %v1274, 96
        %v1276 = vpop.permute.xlu0 %1275
        %v1278 = vsel %vm1102, %v1247, 0
        %v1281 = vsel %vm1128, %v1276, 0
        %1283 = vmatpush.bf16.msra.mxu0 0
        %1284 = vmatpush.bf16.msra.mxu0 0
        %1285 = vmatpush.bf16.msra.mxu0 0
        %1286 = vmatpush.bf16.msra.mxu0 0
        %1287 = vmatpush.bf16.msra.mxu0 0
        %1288 = vmatpush.bf16.msra.mxu0 0
        %1289 = vmatpush.bf16.msra.mxu0 0
        %1290 = vmatpush.bf16.msra.mxu0 %v1281
        %1291 = vmatmul.bf16.gmra.mxu0 %v1278
        %v1292 = vpop.f32.mrf.mxu0
        %v1293 = vadd.f32 0.0, %v1292
        %v1294 = vpop.f32.mrf.mxu0
        %1295 = vdwg.mxu0
        %v1296 = vmul.f32 %v1269, %v1244
        %v1297 = vmul.f32 %v1293, %v1245
        %1300 = vrot.lane.b32.xlu0 %v1296, 32
        %v1301 = vpop.permute.xlu0 %1300
        %1302 = vrot.lane.b32.xlu0 %v1297, 32
        %v1303 = vpop.permute.xlu0 %1302
        %vm1306 = vcmask 523520
        %1307 = vst.msk [vmem:[#allocation3] sm:$0xff] %vm1306, %v1301
        %1308 = vst.msk [vmem:[#allocation3 + $0x8] sm:$0xff] %vm1306, %v1303
        %1309 = vrot.lane.b32.xlu0 %v1170, 64
        %v1310 = vpop.permute.xlu0 %1309
        %1311 = vrot.lane.b32.xlu0 %v1175, 64
        %v1312 = vpop.permute.xlu0 %1311
        %v1314 = vsel %vm1063, %v1310, 0
        %v1317 = vsel %vm1063, %v1312, 0
        %1319 = vmatpush.bf16.xpose.msra.mxu0 0
        %1320 = vmatpush.bf16.xpose.msra.mxu0 0
        %1321 = vmatpush.bf16.xpose.msra.mxu0 0
        %1322 = vmatpush.bf16.xpose.msra.mxu0 0
        %1323 = vmatpush.bf16.xpose.msra.mxu0 0
        %1324 = vmatpush.bf16.xpose.msra.mxu0 0
        %1325 = vmatpush.bf16.xpose.msra.mxu0 0
        %1326 = vmatpush.bf16.xpose.msra.mxu0 %v1317
        %1327 = vmatmul.bf16.gmra.mxu0 %v1314
        %v1328 = vpop.f32.mrf.mxu0
        %v1329 = vadd.f32 0.0, %v1328
        %v1330 = vpop.f32.mrf.mxu0
        %1331 = vdwg.mxu0
        %1332 = vrot.lane.b32.xlu0 %v1199, 64
        %v1333 = vpop.permute.xlu0 %1332
        %1334 = vrot.lane.b32.xlu0 %v1204, 64
        %v1335 = vpop.permute.xlu0 %1334
        %v1337 = vsel %vm1063, %v1333, 0
        %v1340 = vsel %vm1063, %v1335, 0
        %1342 = vmatpush.bf16.xpose.msra.mxu0 0
        %1343 = vmatpush.bf16.xpose.msra.mxu0 0
        %1344 = vmatpush.bf16.xpose.msra.mxu0 0
        %1345 = vmatpush.bf16.xpose.msra.mxu0 0
        %1346 = vmatpush.bf16.xpose.msra.mxu0 0
        %1347 = vmatpush.bf16.xpose.msra.mxu0 0
        %1348 = vmatpush.bf16.xpose.msra.mxu0 0
        %1349 = vmatpush.bf16.xpose.msra.mxu0 %v1340
        %1350 = vmatmul.bf16.gmra.mxu0 %v1337
        %v1351 = vpop.f32.mrf.mxu0
        %v1352 = vadd.f32 0.0, %v1351
        %v1353 = vpop.f32.mrf.mxu0
        %1354 = vdwg.mxu0
        %v1355 = vsel %vm1102, %v1329, -inf
        %1356 = vmax.xlane.f32.xlu0 %v1355
        %v1357 = vpop.xlane.xlu0 %1356
        %v1358 = vsel %vm1102, %v1352, -inf
        %1359 = vmax.xlane.f32.xlu0 %v1358
        %v1360 = vpop.xlane.xlu0 %1359
        %v1361 = vsub.f32 %v1329, %v1357
        %v1362 = vsub.f32 %v1352, %v1360
        %v1363 = vmul.f32 %v1361, 1.442695
        %v1364 = vpow.pop %v1363
        %v1365 = vmul.f32 %v1362, 1.442695
        %v1366 = vpow.pop %v1365
        %v1367 = vsel %vm1102, %v1364, 0.0
        %1368 = vadd.xlane.f32.xlu0 %v1367
        %v1369 = vpop.xlane.xlu0 %1368
        %v1370 = vsel %vm1102, %v1366, 0.0
        %1371 = vadd.xlane.f32.xlu0 %v1370
        %v1372 = vpop.xlane.xlu0 %1371
        %v1373 = vrcp.pop %v1369
        %v1374 = vrcp.pop %v1372
        %v1375 = vpack.c.bf16 %v1364, %v1364
        %v1376 = vpack.c.bf16 %v1366, %v1366
        %1377 = vrot.lane.b32.xlu0 %v1250, 64
        %v1378 = vpop.permute.xlu0 %1377
        %v1380 = vsel %vm1102, %v1375, 0
        %v1383 = vsel %vm1128, %v1378, 0
        %1385 = vmatpush.bf16.msra.mxu0 0
        %1386 = vmatpush.bf16.msra.mxu0 0
        %1387 = vmatpush.bf16.msra.mxu0 0
        %1388 = vmatpush.bf16.msra.mxu0 0
        %1389 = vmatpush.bf16.msra.mxu0 0
        %1390 = vmatpush.bf16.msra.mxu0 0
        %1391 = vmatpush.bf16.msra.mxu0 0
        %1392 = vmatpush.bf16.msra.mxu0 %v1383
        %1393 = vmatmul.bf16.gmra.mxu0 %v1380
        %v1394 = vpop.f32.mrf.mxu0
        %v1395 = vadd.f32 0.0, %v1394
        %v1396 = vpop.f32.mrf.mxu0
        %1397 = vdwg.mxu0
        %1398 = vrot.lane.b32.xlu0 %v1274, 64
        %v1399 = vpop.permute.xlu0 %1398
        %v1401 = vsel %vm1102, %v1376, 0
        %v1404 = vsel %vm1128, %v1399, 0
        %1406 = vmatpush.bf16.msra.mxu0 0
        %1407 = vmatpush.bf16.msra.mxu0 0
        %1408 = vmatpush.bf16.msra.mxu0 0
        %1409 = vmatpush.bf16.msra.mxu0 0
        %1410 = vmatpush.bf16.msra.mxu0 0
        %1411 = vmatpush.bf16.msra.mxu0 0
        %1412 = vmatpush.bf16.msra.mxu0 0
        %1413 = vmatpush.bf16.msra.mxu0 %v1404
        %1414 = vmatmul.bf16.gmra.mxu0 %v1401
        %v1415 = vpop.f32.mrf.mxu0
        %v1416 = vadd.f32 0.0, %v1415
        %v1417 = vpop.f32.mrf.mxu0
        %1418 = vdwg.mxu0
        %v1419 = vmul.f32 %v1395, %v1373
        %v1420 = vmul.f32 %v1416, %v1374
        %1423 = vrot.lane.b32.xlu0 %v1419, 64
        %v1424 = vpop.permute.xlu0 %1423
        %1425 = vrot.lane.b32.xlu0 %v1420, 64
        %v1426 = vpop.permute.xlu0 %1425
        %vm1429 = vcmask 785920
        %1430 = vst.msk [vmem:[#allocation3] sm:$0xff] %vm1429, %v1424
        %1431 = vst.msk [vmem:[#allocation3 + $0x8] sm:$0xff] %vm1429, %v1426
        %1432 = vrot.lane.b32.xlu0 %v1170, 32
        %v1433 = vpop.permute.xlu0 %1432
        %1434 = vrot.lane.b32.xlu0 %v1175, 32
        %v1435 = vpop.permute.xlu0 %1434
        %v1437 = vsel %vm1063, %v1433, 0
        %v1440 = vsel %vm1063, %v1435, 0
        %1442 = vmatpush.bf16.xpose.msra.mxu0 0
        %1443 = vmatpush.bf16.xpose.msra.mxu0 0
        %1444 = vmatpush.bf16.xpose.msra.mxu0 0
        %1445 = vmatpush.bf16.xpose.msra.mxu0 0
        %1446 = vmatpush.bf16.xpose.msra.mxu0 0
        %1447 = vmatpush.bf16.xpose.msra.mxu0 0
        %1448 = vmatpush.bf16.xpose.msra.mxu0 0
        %1449 = vmatpush.bf16.xpose.msra.mxu0 %v1440
        %1450 = vmatmul.bf16.gmra.mxu0 %v1437
        %v1451 = vpop.f32.mrf.mxu0
        %v1452 = vadd.f32 0.0, %v1451
        %v1453 = vpop.f32.mrf.mxu0
        %1454 = vdwg.mxu0
        %1455 = vrot.lane.b32.xlu0 %v1199, 32
        %v1456 = vpop.permute.xlu0 %1455
        %1457 = vrot.lane.b32.xlu0 %v1204, 32
        %v1458 = vpop.permute.xlu0 %1457
        %v1460 = vsel %vm1063, %v1456, 0
        %v1463 = vsel %vm1063, %v1458, 0
        %1465 = vmatpush.bf16.xpose.msra.mxu0 0
        %1466 = vmatpush.bf16.xpose.msra.mxu0 0
        %1467 = vmatpush.bf16.xpose.msra.mxu0 0
        %1468 = vmatpush.bf16.xpose.msra.mxu0 0
        %1469 = vmatpush.bf16.xpose.msra.mxu0 0
        %1470 = vmatpush.bf16.xpose.msra.mxu0 0
        %1471 = vmatpush.bf16.xpose.msra.mxu0 0
        %1472 = vmatpush.bf16.xpose.msra.mxu0 %v1463
        %1473 = vmatmul.bf16.gmra.mxu0 %v1460
        %v1474 = vpop.f32.mrf.mxu0
        %v1475 = vadd.f32 0.0, %v1474
        %v1476 = vpop.f32.mrf.mxu0
        %1477 = vdwg.mxu0
        %v1478 = vsel %vm1102, %v1452, -inf
        %1479 = vmax.xlane.f32.xlu0 %v1478
        %v1480 = vpop.xlane.xlu0 %1479
        %v1481 = vsel %vm1102, %v1475, -inf
        %1482 = vmax.xlane.f32.xlu0 %v1481
        %v1483 = vpop.xlane.xlu0 %1482
        %v1484 = vsub.f32 %v1452, %v1480
        %v1485 = vsub.f32 %v1475, %v1483
        %v1486 = vmul.f32 %v1484, 1.442695
        %v1487 = vpow.pop %v1486
        %v1488 = vmul.f32 %v1485, 1.442695
        %v1489 = vpow.pop %v1488
        %v1490 = vsel %vm1102, %v1487, 0.0
        %1491 = vadd.xlane.f32.xlu0 %v1490
        %v1492 = vpop.xlane.xlu0 %1491
        %v1493 = vsel %vm1102, %v1489, 0.0
        %1494 = vadd.xlane.f32.xlu0 %v1493
        %v1495 = vpop.xlane.xlu0 %1494
        %v1496 = vrcp.pop %v1492
        %v1497 = vrcp.pop %v1495
        %v1498 = vpack.c.bf16 %v1487, %v1487
        %v1499 = vpack.c.bf16 %v1489, %v1489
        %1500 = vrot.lane.b32.xlu0 %v1250, 32
        %v1501 = vpop.permute.xlu0 %1500
        %v1503 = vsel %vm1102, %v1498, 0
        %v1506 = vsel %vm1128, %v1501, 0
        %1508 = vmatpush.bf16.msra.mxu0 0
        %1509 = vmatpush.bf16.msra.mxu0 0
        %1510 = vmatpush.bf16.msra.mxu0 0
        %1511 = vmatpush.bf16.msra.mxu0 0
        %1512 = vmatpush.bf16.msra.mxu0 0
        %1513 = vmatpush.bf16.msra.mxu0 0
        %1514 = vmatpush.bf16.msra.mxu0 0
        %1515 = vmatpush.bf16.msra.mxu0 %v1506
        %1516 = vmatmul.bf16.gmra.mxu0 %v1503
        %v1517 = vpop.f32.mrf.mxu0
        %v1518 = vadd.f32 0.0, %v1517
        %v1519 = vpop.f32.mrf.mxu0
        %1520 = vdwg.mxu0
        %1521 = vrot.lane.b32.xlu0 %v1274, 32
        %v1522 = vpop.permute.xlu0 %1521
        %v1524 = vsel %vm1102, %v1499, 0
        %v1527 = vsel %vm1128, %v1522, 0
        %1529 = vmatpush.bf16.msra.mxu0 0
        %1530 = vmatpush.bf16.msra.mxu0 0
        %1531 = vmatpush.bf16.msra.mxu0 0
        %1532 = vmatpush.bf16.msra.mxu0 0
        %1533 = vmatpush.bf16.msra.mxu0 0
        %1534 = vmatpush.bf16.msra.mxu0 0
        %1535 = vmatpush.bf16.msra.mxu0 0
        %1536 = vmatpush.bf16.msra.mxu0 %v1527
        %1537 = vmatmul.bf16.gmra.mxu0 %v1524
        %v1538 = vpop.f32.mrf.mxu0
        %v1539 = vadd.f32 0.0, %v1538
        %v1540 = vpop.f32.mrf.mxu0
        %1541 = vdwg.mxu0
        %v1542 = vmul.f32 %v1518, %v1496
        %v1543 = vmul.f32 %v1539, %v1497
        %1546 = vrot.lane.b32.xlu0 %v1542, 96
        %v1547 = vpop.permute.xlu0 %1546
        %1548 = vrot.lane.b32.xlu0 %v1543, 96
        %v1549 = vpop.permute.xlu0 %1548
        %vm1552 = vcmask 1048320
        %1553 = vst.msk [vmem:[#allocation3] sm:$0xff] %vm1552, %v1547
        %1554 = vst.msk [vmem:[#allocation3 + $0x8] sm:$0xff] %vm1552, %v1549
        %v1555 = vld [vmem:[#allocation3] sm:$0xff]
        %v1556 = vld [vmem:[#allocation3 + $0x8] sm:$0xff]
        %v1557 = vpack.c.bf16 %v1556, %v1555
        %v1558 = vld [vmem:[%s581] sm:$0xf]
        %v1559 = vld [vmem:[%s581 + $0x4] sm:$0xf]
        %v1560 = vld [vmem:[%s581 + $0x8] sm:$0xf]
        %v1561 = vld [vmem:[%s581 + $0xc] sm:$0xf]
        %v1562 = vld [vmem:[%s581 + $0x10] sm:$0xf]
        %v1563 = vld [vmem:[%s581 + $0x14] sm:$0xf]
        %v1564 = vld [vmem:[%s581 + $0x18] sm:$0xf]
        %v1565 = vld [vmem:[%s581 + $0x1c] sm:$0xf]
        %v1566 = vld [vmem:[%s581 + $0x20] sm:$0xf]
        %v1567 = vld [vmem:[%s581 + $0x24] sm:$0xf]
        %v1568 = vld [vmem:[%s581 + $0x28] sm:$0xf]
        %v1569 = vld [vmem:[%s581 + $0x2c] sm:$0xf]
        %v1570 = vld [vmem:[%s581 + $0x30] sm:$0xf]
        %v1571 = vld [vmem:[%s581 + $0x34] sm:$0xf]
        %v1572 = vld [vmem:[%s581 + $0x38] sm:$0xf]
        %v1573 = vld [vmem:[%s581 + $0x3c] sm:$0xf]
        %v1574 = vperm.slane %v705, 3
        %v1591 = vunpack.c.l.b16 %v1558
        %v1592 = vunpack.c.l.b16 %v1559
        %v1593 = vunpack.c.l.b16 %v1560
        %v1594 = vunpack.c.l.b16 %v1561
        %v1595 = vunpack.c.l.b16 %v1562
        %v1596 = vunpack.c.l.b16 %v1563
        %v1597 = vunpack.c.l.b16 %v1564
        %v1598 = vunpack.c.l.b16 %v1565
        %v1599 = vunpack.c.l.b16 %v1566
        %v1600 = vunpack.c.l.b16 %v1567
        %v1601 = vunpack.c.l.b16 %v1568
        %v1602 = vunpack.c.l.b16 %v1569
        %v1603 = vunpack.c.l.b16 %v1570
        %v1604 = vunpack.c.l.b16 %v1571
        %v1605 = vunpack.c.l.b16 %v1572
        %v1606 = vunpack.c.l.b16 %v1573
        %v1607 = vpack.c.b16 %v1592, %v1591
        %v1608 = vpack.c.b16 %v1594, %v1593
        %v1609 = vpack.c.b16 %v1596, %v1595
        %v1610 = vpack.c.b16 %v1598, %v1597
        %v1611 = vpack.c.b16 %v1600, %v1599
        %v1612 = vpack.c.b16 %v1602, %v1601
        %v1613 = vpack.c.b16 %v1604, %v1603
        %v1614 = vpack.c.b16 %v1606, %v1605
        %1623 = vmatpush.bf16.msra.mxu0 %v1614
        %1624 = vmatpush.bf16.msra.mxu0 %v1613
        %1625 = vmatpush.bf16.msra.mxu0 %v1612
        %1626 = vmatpush.bf16.msra.mxu0 %v1611
        %1627 = vmatpush.bf16.msra.mxu0 %v1610
        %1628 = vmatpush.bf16.msra.mxu0 %v1609
        %1629 = vmatpush.bf16.msra.mxu0 %v1608
        %1630 = vmatpush.bf16.msra.mxu0 %v1607
        %1631 = vmatmul.bf16.gmra.mxu0 %v1557
        %v1632 = vpop.f32.mrf.mxu0
        %v1633 = vadd.f32 %v1574, %v1632
        %v1634 = vpop.f32.mrf.mxu0
        %v1635 = vadd.f32 %v1574, %v1634
        %1636 = vdwg.mxu0
        %v1637 = vadd.f32 %v810, %v1633
        %v1638 = vadd.f32 %v811, %v1635
        %1639 = vadd.xlane.f32.xlu0 %v1637
        %v1640 = vpop.xlane.xlu0 %1639
        %1641 = vadd.xlane.f32.xlu0 %v1638
        %v1642 = vpop.xlane.xlu0 %1641
        %v1643 = vmul.f32 %v1640, 0.03125
        %v1644 = vmul.f32 %v1642, 0.03125
        %v1645 = vmul.f32 %v1643, %v704
        %v1646 = vmul.f32 %v1644, %v704
        %v1647 = vsub.f32 %v1637, %v1645
        %v1648 = vsub.f32 %v1638, %v1646
        %v1649 = vmul.f32 %v1647, %v1647
        %v1650 = vmul.f32 %v1648, %v1648
        %1651 = vadd.xlane.f32.xlu0 %v1649
        %v1652 = vpop.xlane.xlu0 %1651
        %1653 = vadd.xlane.f32.xlu0 %v1650
        %v1654 = vpop.xlane.xlu0 %1653
        %v1655 = vmul.f32 %v1652, 0.03125
        %v1656 = vmul.f32 %v1654, 0.03125
        %v1657 = vadd.f32 %v1655, 1e-05
        %v1658 = vadd.f32 %v1656, 1e-05
        %v1659 = vrsqrt.pop %v1657
        %v1660 = vmul.f32 %v1659, %v1657
        %v1661 = vmul.f32 %v1660, %v1659
        %v1662 = vmul.f32 0.5, %v1661
        %v1663 = vsub.f32 1.5, %v1662
        %v1664 = vmul.f32 %v1659, %v1663
        %vm1665 = vweird.f32 %v1657
        %vm1666 = vweird.f32 %v1659
        %vm1667 = vmor %vm1665, %vm1666
        %v1668 = vsel %vm1667, %v1659, %v1664
        %v1669 = vrsqrt.pop %v1658
        %v1670 = vmul.f32 %v1669, %v1658
        %v1671 = vmul.f32 %v1670, %v1669
        %v1672 = vmul.f32 0.5, %v1671
        %v1673 = vsub.f32 1.5, %v1672
        %v1674 = vmul.f32 %v1669, %v1673
        %vm1675 = vweird.f32 %v1658
        %vm1676 = vweird.f32 %v1669
        %vm1677 = vmor %vm1675, %vm1676
        %v1678 = vsel %vm1677, %v1669, %v1674
        %v1679 = vmul.f32 %v1647, %v1668
        %v1680 = vmul.f32 %v1648, %v1678
        %v1681 = vperm.slane %v705, 5
        %v1682 = vmul.f32 %v1679, %v1681
        %v1683 = vmul.f32 %v1680, %v1681
        %v1684 = vperm.slane %v705, 6
        %v1685 = vadd.f32 %v1682, %v1684
        %v1686 = vadd.f32 %v1683, %v1684
        %v1687 = vpack.c.bf16 %v1686, %v1685
        %v1688 = vld [vmem:[%s591] sm:$0xf]
        %v1689 = vld [vmem:[%s591 + $0x4] sm:$0xf]
        %v1690 = vld [vmem:[%s591 + $0x8] sm:$0xf]
        %v1691 = vld [vmem:[%s591 + $0xc] sm:$0xf]
        %v1692 = vld [vmem:[%s591 + $0x10] sm:$0xf]
        %v1693 = vld [vmem:[%s591 + $0x14] sm:$0xf]
        %v1694 = vld [vmem:[%s591 + $0x18] sm:$0xf]
        %v1695 = vld [vmem:[%s591 + $0x1c] sm:$0xf]
        %v1696 = vld [vmem:[%s591 + $0x20] sm:$0xf]
        %v1697 = vld [vmem:[%s591 + $0x24] sm:$0xf]
        %v1698 = vld [vmem:[%s591 + $0x28] sm:$0xf]
        %v1699 = vld [vmem:[%s591 + $0x2c] sm:$0xf]
        %v1700 = vld [vmem:[%s591 + $0x30] sm:$0xf]
        %v1701 = vld [vmem:[%s591 + $0x34] sm:$0xf]
        %v1702 = vld [vmem:[%s591 + $0x38] sm:$0xf]
        %v1703 = vld [vmem:[%s591 + $0x3c] sm:$0xf]
        %v1705 = vperm.slane %v707, 0
        %v1723 = vunpack.c.l.b16 %v1688
        %v1724 = vunpack.c.l.b16 %v1689
        %v1725 = vunpack.c.l.b16 %v1690
        %v1726 = vunpack.c.l.b16 %v1691
        %v1727 = vunpack.c.l.b16 %v1692
        %v1728 = vunpack.c.l.b16 %v1693
        %v1729 = vunpack.c.l.b16 %v1694
        %v1730 = vunpack.c.l.b16 %v1695
        %v1731 = vunpack.c.l.b16 %v1696
        %v1732 = vunpack.c.l.b16 %v1697
        %v1733 = vunpack.c.l.b16 %v1698
        %v1734 = vunpack.c.l.b16 %v1699
        %v1735 = vunpack.c.l.b16 %v1700
        %v1736 = vunpack.c.l.b16 %v1701
        %v1737 = vunpack.c.l.b16 %v1702
        %v1738 = vunpack.c.l.b16 %v1703
        %v1739 = vpack.c.b16 %v1724, %v1723
        %v1740 = vpack.c.b16 %v1726, %v1725
        %v1741 = vpack.c.b16 %v1728, %v1727
        %v1742 = vpack.c.b16 %v1730, %v1729
        %v1743 = vpack.c.b16 %v1732, %v1731
        %v1744 = vpack.c.b16 %v1734, %v1733
        %v1745 = vpack.c.b16 %v1736, %v1735
        %v1746 = vpack.c.b16 %v1738, %v1737
        %1755 = vmatpush.bf16.msra.mxu0 %v1746
        %1756 = vmatpush.bf16.msra.mxu0 %v1745
        %1757 = vmatpush.bf16.msra.mxu0 %v1744
        %1758 = vmatpush.bf16.msra.mxu0 %v1743
        %1759 = vmatpush.bf16.msra.mxu0 %v1742
        %1760 = vmatpush.bf16.msra.mxu0 %v1741
        %1761 = vmatpush.bf16.msra.mxu0 %v1740
        %1762 = vmatpush.bf16.msra.mxu0 %v1739
        %1763 = vmatmul.bf16.gmra.mxu0 %v1687
        %v1764 = vpop.f32.mrf.mxu0
        %v1765 = vadd.f32 %v1705, %v1764
        %v1766 = vpop.f32.mrf.mxu0
        %v1767 = vadd.f32 %v1705, %v1766
        %1768 = vdwg.mxu0
        %v1769 = vmax.f32 %v1765, 0.0
        %v1770 = vmax.f32 %v1767, 0.0
        %v1771 = vpack.c.bf16 %v1770, %v1769
        %v1772 = vld [vmem:[%s601] sm:$0xf]
        %v1773 = vld [vmem:[%s601 + $0x4] sm:$0xf]
        %v1774 = vld [vmem:[%s601 + $0x8] sm:$0xf]
        %v1775 = vld [vmem:[%s601 + $0xc] sm:$0xf]
        %v1776 = vld [vmem:[%s601 + $0x10] sm:$0xf]
        %v1777 = vld [vmem:[%s601 + $0x14] sm:$0xf]
        %v1778 = vld [vmem:[%s601 + $0x18] sm:$0xf]
        %v1779 = vld [vmem:[%s601 + $0x1c] sm:$0xf]
        %v1780 = vld [vmem:[%s601 + $0x20] sm:$0xf]
        %v1781 = vld [vmem:[%s601 + $0x24] sm:$0xf]
        %v1782 = vld [vmem:[%s601 + $0x28] sm:$0xf]
        %v1783 = vld [vmem:[%s601 + $0x2c] sm:$0xf]
        %v1784 = vld [vmem:[%s601 + $0x30] sm:$0xf]
        %v1785 = vld [vmem:[%s601 + $0x34] sm:$0xf]
        %v1786 = vld [vmem:[%s601 + $0x38] sm:$0xf]
        %v1787 = vld [vmem:[%s601 + $0x3c] sm:$0xf]
        %v1788 = vperm.slane %v705, 4
        %v1805 = vunpack.c.l.b16 %v1772
        %v1806 = vunpack.c.l.b16 %v1773
        %v1807 = vunpack.c.l.b16 %v1774
        %v1808 = vunpack.c.l.b16 %v1775
        %v1809 = vunpack.c.l.b16 %v1776
        %v1810 = vunpack.c.l.b16 %v1777
        %v1811 = vunpack.c.l.b16 %v1778
        %v1812 = vunpack.c.l.b16 %v1779
        %v1813 = vunpack.c.l.b16 %v1780
        %v1814 = vunpack.c.l.b16 %v1781
        %v1815 = vunpack.c.l.b16 %v1782
        %v1816 = vunpack.c.l.b16 %v1783
        %v1817 = vunpack.c.l.b16 %v1784
        %v1818 = vunpack.c.l.b16 %v1785
        %v1819 = vunpack.c.l.b16 %v1786
        %v1820 = vunpack.c.l.b16 %v1787
        %v1821 = vpack.c.b16 %v1806, %v1805
        %v1822 = vpack.c.b16 %v1808, %v1807
        %v1823 = vpack.c.b16 %v1810, %v1809
        %v1824 = vpack.c.b16 %v1812, %v1811
        %v1825 = vpack.c.b16 %v1814, %v1813
        %v1826 = vpack.c.b16 %v1816, %v1815
        %v1827 = vpack.c.b16 %v1818, %v1817
        %v1828 = vpack.c.b16 %v1820, %v1819
        %1837 = vmatpush.bf16.msra.mxu0 %v1828
        %1838 = vmatpush.bf16.msra.mxu0 %v1827
        %1839 = vmatpush.bf16.msra.mxu0 %v1826
        %1840 = vmatpush.bf16.msra.mxu0 %v1825
        %1841 = vmatpush.bf16.msra.mxu0 %v1824
        %1842 = vmatpush.bf16.msra.mxu0 %v1823
        %1843 = vmatpush.bf16.msra.mxu0 %v1822
        %1844 = vmatpush.bf16.msra.mxu0 %v1821
        %1845 = vmatmul.bf16.gmra.mxu0 %v1771
        %v1846 = vpop.f32.mrf.mxu0
        %v1847 = vadd.f32 %v1788, %v1846
        %v1848 = vpop.f32.mrf.mxu0
        %v1849 = vadd.f32 %v1788, %v1848
        %1850 = vdwg.mxu0
        %v1851 = vadd.f32 %v1685, %v1847
        %v1852 = vadd.f32 %v1686, %v1849
        %1853 = vadd.xlane.f32.xlu0 %v1851
        %v1854 = vpop.xlane.xlu0 %1853
        %1855 = vadd.xlane.f32.xlu0 %v1852
        %v1856 = vpop.xlane.xlu0 %1855
        %v1857 = vmul.f32 %v1854, 0.03125
        %v1858 = vmul.f32 %v1856, 0.03125
        %v1859 = vmul.f32 %v1857, %v704
        %v1860 = vmul.f32 %v1858, %v704
        %v1861 = vsub.f32 %v1851, %v1859
        %v1862 = vsub.f32 %v1852, %v1860
        %v1863 = vmul.f32 %v1861, %v1861
        %v1864 = vmul.f32 %v1862, %v1862
        %1865 = vadd.xlane.f32.xlu0 %v1863
        %v1866 = vpop.xlane.xlu0 %1865
        %1867 = vadd.xlane.f32.xlu0 %v1864
        %v1868 = vpop.xlane.xlu0 %1867
        %v1869 = vmul.f32 %v1866, 0.03125
        %v1870 = vmul.f32 %v1868, 0.03125
        %v1871 = vadd.f32 %v1869, 1e-05
        %v1872 = vadd.f32 %v1870, 1e-05
        %v1873 = vrsqrt.pop %v1871
        %v1874 = vmul.f32 %v1873, %v1871
        %v1875 = vmul.f32 %v1874, %v1873
        %v1876 = vmul.f32 0.5, %v1875
        %v1877 = vsub.f32 1.5, %v1876
        %v1878 = vmul.f32 %v1873, %v1877
        %vm1879 = vweird.f32 %v1871
        %vm1880 = vweird.f32 %v1873
        %vm1881 = vmor %vm1879, %vm1880
        %v1882 = vsel %vm1881, %v1873, %v1878
        %v1883 = vrsqrt.pop %v1872
        %v1884 = vmul.f32 %v1883, %v1872
        %v1885 = vmul.f32 %v1884, %v1883
        %v1886 = vmul.f32 0.5, %v1885
        %v1887 = vsub.f32 1.5, %v1886
        %v1888 = vmul.f32 %v1883, %v1887
        %vm1889 = vweird.f32 %v1872
        %vm1890 = vweird.f32 %v1883
        %vm1891 = vmor %vm1889, %vm1890
        %v1892 = vsel %vm1891, %v1883, %v1888
        %v1893 = vmul.f32 %v1861, %v1882
        %v1894 = vmul.f32 %v1862, %v1892
        %v1895 = vperm.slane %v705, 7
        %v1896 = vmul.f32 %v1893, %v1895
        %v1897 = vmul.f32 %v1894, %v1895
        %v1898 = vperm.slane %v706, 0
        %v1899 = vadd.f32 %v1896, %v1898
        %v1900 = vadd.f32 %v1897, %v1898
        %1901 = vst [vmem:[#allocation2] sm:$0xff] %v1899
        %1902 = vst [vmem:[#allocation2 + $0x8] sm:$0xff] %v1900
        %p1903 = scmp.eq.s32.totalorder %s38, 1
        // Predicated region
        $region101: #{tpu_custom_call.1} parent=71 // pred_check
          %p1904 = pneg %p1903
        $region102: #{tpu_custom_call.1} parent=71 // pred_check_branch
          %1906 = sbr.rel (%p1904) target = $region104
        $region103: #{tpu_custom_call.1} parent=71 // pred_region
          %v1907 = vpack.c.bf16 %v1900, %v1899
          %v1908 = vld [vmem:[#allocation13] sm:$0xf]
          %v1909 = vld [vmem:[#allocation13 + $0x4] sm:$0xf]
          %v1910 = vld [vmem:[#allocation13 + $0x8] sm:$0xf]
          %v1911 = vld [vmem:[#allocation13 + $0xc] sm:$0xf]
          %v1912 = vld [vmem:[#allocation13 + $0x10] sm:$0xf]
          %v1913 = vld [vmem:[#allocation13 + $0x14] sm:$0xf]
          %v1914 = vld [vmem:[#allocation13 + $0x18] sm:$0xf]
          %v1915 = vld [vmem:[#allocation13 + $0x1c] sm:$0xf]
          %v1916 = vld [vmem:[#allocation13 + $0x20] sm:$0xf]
          %v1917 = vld [vmem:[#allocation13 + $0x24] sm:$0xf]
          %v1918 = vld [vmem:[#allocation13 + $0x28] sm:$0xf]
          %v1919 = vld [vmem:[#allocation13 + $0x2c] sm:$0xf]
          %v1920 = vld [vmem:[#allocation13 + $0x30] sm:$0xf]
          %v1921 = vld [vmem:[#allocation13 + $0x34] sm:$0xf]
          %v1922 = vld [vmem:[#allocation13 + $0x38] sm:$0xf]
          %v1923 = vld [vmem:[#allocation13 + $0x3c] sm:$0xf]
          %v1924 = vld [vmem:[%s12] sm:$0x1]
          %v1926 = vperm.slane %v1924, 0
          %v1944 = vunpack.c.l.b16 %v1908
          %v1945 = vunpack.c.l.b16 %v1909
          %v1946 = vunpack.c.l.b16 %v1910
          %v1947 = vunpack.c.l.b16 %v1911
          %v1948 = vunpack.c.l.b16 %v1912
          %v1949 = vunpack.c.l.b16 %v1913
          %v1950 = vunpack.c.l.b16 %v1914
          %v1951 = vunpack.c.l.b16 %v1915
          %v1952 = vunpack.c.l.b16 %v1916
          %v1953 = vunpack.c.l.b16 %v1917
          %v1954 = vunpack.c.l.b16 %v1918
          %v1955 = vunpack.c.l.b16 %v1919
          %v1956 = vunpack.c.l.b16 %v1920
          %v1957 = vunpack.c.l.b16 %v1921
          %v1958 = vunpack.c.l.b16 %v1922
          %v1959 = vunpack.c.l.b16 %v1923
          %v1960 = vpack.c.b16 %v1945, %v1944
          %v1961 = vpack.c.b16 %v1947, %v1946
          %v1962 = vpack.c.b16 %v1949, %v1948
          %v1963 = vpack.c.b16 %v1951, %v1950
          %v1964 = vpack.c.b16 %v1953, %v1952
          %v1965 = vpack.c.b16 %v1955, %v1954
          %v1966 = vpack.c.b16 %v1957, %v1956
          %v1967 = vpack.c.b16 %v1959, %v1958
          %1976 = vmatpush.bf16.msra.mxu0 %v1967
          %1977 = vmatpush.bf16.msra.mxu0 %v1966
          %1978 = vmatpush.bf16.msra.mxu0 %v1965
          %1979 = vmatpush.bf16.msra.mxu0 %v1964
          %1980 = vmatpush.bf16.msra.mxu0 %v1963
          %1981 = vmatpush.bf16.msra.mxu0 %v1962
          %1982 = vmatpush.bf16.msra.mxu0 %v1961
          %1983 = vmatpush.bf16.msra.mxu0 %v1960
          %1984 = vmatmul.bf16.gmra.mxu0 %v1907
          %v1985 = vpop.f32.mrf.mxu0
          %v1986 = vadd.f32 %v1926, %v1985
          %v1987 = vpop.f32.mrf.mxu0
          %v1988 = vadd.f32 %v1926, %v1987
          %1989 = vdwg.mxu0
          %1990 = vst [vmem:[#allocation15] sm:$0xff] %v1986
          %1991 = vst [vmem:[#allocation15 + $0x8] sm:$0xff] %v1988
        $region104: #{tpu_custom_call.1} parent=71 // pred_fallthru
          _
        // Predicated region
        $region105: #{tpu_custom_call.1} parent=71 // pred_check
          %p1992 = pneg %p376
        $region106: #{tpu_custom_call.1} parent=71 // pred_check_branch
          %1994 = sbr.rel (%p1992) target = $region108
        $region107: #{tpu_custom_call.1} parent=71 // pred_region
          %s1995 = smul.u32 2, %s37
          %1997 = vsyncadd [#allocation6], 0
          %s1998 = smul.addr %s1995, 8
          %s1999 = scalar_lea.hbm %s13, %s1998
          %s2000 = sshll.u32 [#allocation15], 4
          %s2001 = int_to_ptr.vmem [resolvable:$true] %s2000
          %s2002 = sshll.u32 %s1999, 4
          %s2003 = int_to_ptr.hbm [resolvable:$true] %s2002
          %2008 = dma.vmem_to_hbm [thread:$0]  %s2001, 256, %s2003, [#allocation6], 128, 128, 8
        $region108: #{tpu_custom_call.1} parent=71 // pred_fallthru
          _
        // Predicated region
        $region109: #{tpu_custom_call.1} parent=71 // pred_check
          %p2009 = pneg %p376
        $region110: #{tpu_custom_call.1} parent=71 // pred_check_branch
          %2011 = sbr.rel (%p2009) target = $region112
        $region111: #{tpu_custom_call.1} parent=71 // pred_region
          %2013 = dma.done [#allocation6], 256
        $region112: #{tpu_custom_call.1} parent=71 // pred_fallthru
          _
      $region72: #{tpu_custom_call.1} parent=5 // pred_fallthru
        _
      %p2014 = scmp.le.s32.totalorder 2, %s28
      // Predicated region
      $region113: #{tpu_custom_call.1} parent=5 // pred_check
        %p2015 = pneg %p2014
      $region114: #{tpu_custom_call.1} parent=5 // pred_check_branch
        %2017 = sbr.rel (%p2015) target = $region116
      $region115: #{tpu_custom_call.1} parent=5 // pred_region
        %s2018 = ssub.s32 %s28, 2
      $region116: #{tpu_custom_call.1} parent=5 // pred_fallthru
        _
    $region6: #{tpu_custom_call.1} parent=1 // loop_footer
      %s32 = sadd.s32 1, %s28
    $region7: #{tpu_custom_call.1} parent=1 // loop_footer_branch
      %27 = sbr.rel target = $region3
    $region8: #{tpu_custom_call.1} parent=1 // loop_exit
      _
    %2019 = vsyncpa [#allocation5], 1
    %s2020 = scalar_lea.sflag [#allocation5], 1
    %2021 = vsyncpa %s2020, 1
    %2022 = vsyncpa [#allocation8], 1
    %s2023 = scalar_lea.sflag [#allocation8], 1
    %2024 = vsyncpa %s2023, 1
    %2025 = vsyncpa [#allocation11], 1
    %s2026 = scalar_lea.sflag [#allocation11], 1
    %2027 = vsyncpa %s2026, 1
    %2028 = vsyncpa [#allocation14], 1
    %2029 = vsyncpa [#allocation6], 1
    %s2030 = scalar_lea.sflag [#allocation6], 1
    %2031 = vsyncpa %s2030, 1

</llo_original>
